<compile_context>
chip_gen: v7x
topology: tpu7x:2x2x1
jax: 0.10.0
libtpu: 0.0.40
codegen_flags: <defaults>
</compile_context>

<pallas_src>
import numpy as np
import jax
import jax.numpy as jnp
from jax import lax
from jax.experimental import pallas as pl
from jax.experimental.pallas import tpu as pltpu


# ----------------------------------------------------------------------------
# The per-corner kernel body (grid = (2,), one step per spectral corner).
#   x      : (B*C, H*W)        input, rows = (batch, channel), resident both steps
#   scal   : (B*C, 2)          [fc weight | fc bias] per (b, c) row
#   fdft   : (H*W, 2*nm)       this corner's partial forward rDFT, bf16, [cos | -sin]
#   wspec  : (B*C, 8*nm)       pre-signed spectral weight planes [wA|wB|wC|wD]
#   mix    : (2*B*D, B*C)      [kron(I_B, linear^T).re ; kron(I_B, linear^T).im]
#   idft   : (2*nm, H*W)       this corner's partial inverse rDFT, bf16, [Mr ; Mi]
#   wconv  : (B*D, B*C)        block-diagonal 1x1 conv weight kron(I_B, W)
#   bias   : (B*D, H*W)        irfft2(freq bias1/bias2) + conv bias (precomputed)
#   o      : (B*D, H*W)        gelu(irfft2(spectral) + conv1x1(x) + bias)
#   xg_scr : (B*C, H*W) bf16   gated input (computed once at step 0)
#   acc_scr: (B*D, H*W) f32    spatial accumulator across the two corners
# ----------------------------------------------------------------------------
def _ffo_corner_kernel(x_ref, scal_ref, fdft_ref, wspec_ref, mix_ref,
                       idft_ref, wconv_ref, bias_ref, o_ref, xg_scr, acc_scr):
    p = pl.program_id(0)

    # --- step 0: gating (AvgPool(1,H,W) -> grouped 1x1 -> sigmoid -> threshold),
    #     store the gated input as bf16 for the MXU, zero the accumulator. ---
    @pl.when(p == 0)
    def _init():
        x = x_ref[...]
        mean = jnp.mean(x, axis=-1, keepdims=True)                    # (BC, 1)
        thr = jax.nn.sigmoid(scal_ref[:, 0:1] * mean + scal_ref[:, 1:2])
        xg_scr[...] = jnp.where(x > thr, 0.0, x).astype(jnp.bfloat16)
        acc_scr[...] = jnp.zeros_like(acc_scr)

    # --- forward partial rDFT of this corner's m1*m2 modes: one bf16 matmul ---
    xf = jnp.dot(xg_scr[...], fdft_ref[...],
                 preferred_element_type=jnp.float32)                  # (BC, 2nm) = [Xr|Xi]
    n2 = xf.shape[-1]                                                 # 2 * m1 * m2
    xfr = pltpu.roll(xf, shift=n2 // 2, axis=1)                       # [Xi | Xr]

    # --- elementwise complex spectral weights via pre-signed lane-packed planes ---
    ws = wspec_ref[...]
    t = xf * ws[:, 0 * n2:1 * n2] + xfr * ws[:, 1 * n2:2 * n2]        # [tr  | ti]
    t2 = xfr * ws[:, 2 * n2:3 * n2] + xf * ws[:, 3 * n2:4 * n2]       # [-ti | tr]

    # --- complex channel mixing (linear1 or linear2, depending on the corner) ---
    bd = acc_scr.shape[0]
    y = (jnp.dot(mix_ref[:bd, :], t, preferred_element_type=jnp.float32)
         + jnp.dot(mix_ref[bd:, :], t2, preferred_element_type=jnp.float32))  # [Or|Oi]

    # --- inverse partial rDFT, accumulated across the two corners (K=128 dot) ---
    acc_scr[...] += jnp.dot(y.astype(jnp.bfloat16), idft_ref[...],
                            preferred_element_type=jnp.float32)       # (BD, HW)

    # --- last step: 1x1-conv residual + (freq+conv) bias + exact (erf) GELU ---
    @pl.when(p == pl.num_programs(0) - 1)
    def _finalize():
        x2 = jnp.dot(wconv_ref[...], x_ref[...], preferred_element_type=jnp.float32)
        yout = acc_scr[...] + x2 + bias_ref[...]
        o_ref[...] = 0.5 * yout * (1.0 + lax.erf(yout * np.float32(1.0 / np.sqrt(2.0))))


# ----------------------------------------------------------------------------
# Constant / parameter packing (done once, outside the jitted forward).
# ----------------------------------------------------------------------------
def _build_dft_mats(H, W, m1, m2):
    """Per-corner partial forward / inverse real-2D-DFT matrices.

    Corner 0 keeps frequency rows [0..m1-1], corner 1 keeps [H-m1..H-1]; columns
    y in [0..m2-1].  The inverse matches torch.fft.irfft2 (imag of the y=0 / Nyquist
    columns of the last axis is ignored, 2x weight on conjugate-redundant columns).
    Returns fdft (2, H*W, 2*nm) and idft (2, 2*nm, H*W), nm = m1*m2.
    """
    nm = m1 * m2
    h = np.arange(H, dtype=np.float64)
    w = np.arange(W, dtype=np.float64)
    ki = np.arange(m2)
    k = ki.astype(np.float64)
    two_pi = 2.0 * np.pi
    ck = np.where((ki == 0) | (2 * ki == W), 1.0, 2.0)
    aw = ck[None, :] * np.cos(two_pi * np.outer(w, k) / W) / W                # (W, m2)
    bw = -ck[None, :] * np.sin(two_pi * np.outer(w, k) / W) / W

    fblocks, iblocks = [], []
    for rows in (np.arange(m1, dtype=np.float64),
                 np.arange(H - m1, H, dtype=np.float64)):
        # forward: X[x,y] = sum_{h,w} xg[h,w] * exp(-2i*pi*(rows[x]*h/H + y*w/W))
        theta = (two_pi * np.outer(h, rows)[:, None, :, None] / H
                 + two_pi * np.outer(w, k)[None, :, None, :] / W)             # (H,W,m1,m2)
        fblocks.append(np.concatenate([np.cos(theta).reshape(H * W, nm),
                                       (-np.sin(theta)).reshape(H * W, nm)], axis=1))
        # inverse: x1 += Yr @ Mr + Yi @ Mi  (per corner)
        er = np.cos(two_pi * np.outer(h, rows) / H) / H                       # (H, m1)
        ei = np.sin(two_pi * np.outer(h, rows) / H) / H
        mr = (np.einsum('hx,wy->xyhw', er, aw)
              + np.einsum('hx,wy->xyhw', ei, bw)).reshape(nm, H * W)
        mi = (np.einsum('hx,wy->xyhw', er, bw)
              - np.einsum('hx,wy->xyhw', ei, aw)).reshape(nm, H * W)
        iblocks.append(np.concatenate([mr, mi], axis=0))
    fdft = np.stack(fblocks, axis=0).astype(np.float32)                       # (2, HW, 2nm)
    idft = np.stack(iblocks, axis=0).astype(np.float32)                       # (2, 2nm, HW)
    return fdft, idft


def pack_ffo_params(p, B, H, W, m1, m2):
    C = p["fc_w"].shape[0]
    D = p["w_conv"].shape[0]
    # The PyTorch module writes the out_channels-wide spectral result into an
    # in_channels-wide buffer, and hard-codes AvgPool3d((1,32,32)).
    assert C == D, "FFO requires out_channels == in_channels"
    assert H == 32 and W == 32, "FFO's AvgPool3d kernel is hard-coded to (1,32,32)"
    assert 2 * m1 <= H and m2 <= W // 2 + 1

    nm = m1 * m2
    fdft_np, idft_np = _build_dft_mats(H, W, m1, m2)
    fdft = jnp.asarray(fdft_np, dtype=jnp.bfloat16)       # bf16: halves constant DMA
    idft = jnp.asarray(idft_np, dtype=jnp.bfloat16)

    # (B*C, 2): [fc weight | fc bias] for the gating threshold
    scal = jnp.concatenate([jnp.tile(p["fc_w"], (B, 1)),
                            jnp.tile(p["fc_b"], (B, 1))], axis=1)

    # Pre-signed, lane-packed spectral weight planes per corner:
    #   t  = xf*wA + roll(xf)*wB = [tr | ti]
    #   t2 = roll(xf)*wC + xf*wD = [-ti | tr]
    def corner_wspec(wr, wi):
        wr = wr.reshape(C, nm)
        wi = wi.reshape(C, nm)
        wA = jnp.concatenate([wr, wr], axis=1)
        wB = jnp.concatenate([-wi, wi], axis=1)
        wC = jnp.concatenate([-wr, wr], axis=1)
        wD = jnp.concatenate([-wi, -wi], axis=1)
        return jnp.concatenate([wA, wB, wC, wD], axis=1)              # (C, 8*nm)
    wspec = jnp.stack([corner_wspec(p["w1r"], p["w1i"]),
                       corner_wspec(p["w2r"], p["w2i"])], axis=0)
    wspec = jnp.tile(wspec, (1, B, 1))                                 # (2, B*C, 8*nm)

    # Per-corner complex channel mixing: [kron(I_B, l^T).re ; kron(I_B, l^T).im]
    eye_b = jnp.eye(B, dtype=jnp.float32)

    def corner_mix(lrT, liT):
        return jnp.concatenate([jnp.kron(eye_b, lrT),
                                jnp.kron(eye_b, liT)], axis=0)         # (2*B*D, B*C)
    mix = jnp.stack([corner_mix(p["l1rT"], p["l1iT"]),
                     corner_mix(p["l2rT"], p["l2iT"])], axis=0)        # (2, 2BD, BC)

    # Spatial constant = irfft2 of the frequency-domain bias1/bias2 + 1x1-conv bias.
    out_ft = jnp.zeros((D, H, W // 2 + 1), dtype=jnp.complex64)
    b1 = (p["b1r"] + 1j * p["b1i"]).reshape(D, 1, 1).astype(jnp.complex64)
    b2 = (p["b2r"] + 1j * p["b2i"]).reshape(D, 1, 1).astype(jnp.complex64)
    out_ft = out_ft.at[:, :m1, :m2].set(jnp.broadcast_to(b1, (D, m1, m2)))
    out_ft = out_ft.at[:, H - m1:, :m2].set(jnp.broadcast_to(b2, (D, m1, m2)))
    bias_sp = jnp.fft.irfft2(out_ft, s=(H, W)).reshape(D, H * W)
    bias_sp = jnp.tile(bias_sp + p["w_bias"], (B, 1)).astype(jnp.float32)   # (B*D, HW)

    wconv = jnp.kron(eye_b, p["w_conv"])          # block-diagonal 1x1 conv, (B*D, B*C)

    return {"scal": scal, "fdft": fdft, "wspec": wspec, "mix": mix,
            "idft": idft, "wconv": wconv, "bias_sp": bias_sp}


@jax.jit
def ffo_forward(x, packed):
    """Fused FFO forward: one pallas_call, grid=(2,) over the spectral corners."""
    B, C, H, W = x.shape
    BC, HW = B * C, H * W
    BD = packed["wconv"].shape[0]
    M2 = packed["fdft"].shape[-1]                 # 2 * m1 * m2 lanes per corner

    out = pl.pallas_call(
        _ffo_corner_kernel,
        out_shape=jax.ShapeDtypeStruct((BD, HW), jnp.float32),
        grid_spec=pltpu.PrefetchScalarGridSpec(
            num_scalar_prefetch=0,
            grid=(2,),                                                # one step per corner
            in_specs=[
                pl.BlockSpec((BC, HW), lambda p: (0, 0)),             # x (fetched once)
                pl.BlockSpec((BC, 2), lambda p: (0, 0)),              # gate scalars
                pl.BlockSpec((None, HW, M2), lambda p: (p, 0, 0)),    # fdft corner block
                pl.BlockSpec((None, BC, 4 * M2), lambda p: (p, 0, 0)),  # wspec corner
                pl.BlockSpec((None, 2 * BD, BC), lambda p: (p, 0, 0)),  # mix corner
                pl.BlockSpec((None, M2, HW), lambda p: (p, 0, 0)),    # idft corner block
                pl.BlockSpec((BD, BC), lambda p: (0, 0)),             # 1x1 conv weight
                pl.BlockSpec((BD, HW), lambda p: (0, 0)),             # spatial bias
            ],
            out_specs=pl.BlockSpec((BD, HW), lambda p: (0, 0)),
            scratch_shapes=[pltpu.VMEM((BC, HW), jnp.bfloat16),       # gated input
                            pltpu.VMEM((BD, HW), jnp.float32)],       # x1 accumulator
        ),
        compiler_params=pltpu.CompilerParams(
            dimension_semantics=("arbitrary",)),
    )(x.reshape(BC, HW), packed["scal"], packed["fdft"], packed["wspec"],
      packed["mix"], packed["idft"], packed["wconv"], packed["bias_sp"])
    return out.reshape(B, BD // B, H, W)


# ----------------------------------------------------------------------------
# Pure-JAX reference (mirrors the PyTorch forward exactly), for validation.
# ----------------------------------------------------------------------------
def ffo_reference(x, p, modes1, modes2):
    B, C, H, W = x.shape
    D = p["w_conv"].shape[0]
    mean = jnp.mean(x, axis=(2, 3), keepdims=True)                       # AvgPool3d((1,H,W))
    thr = jax.nn.sigmoid(p["fc_w"].reshape(1, C, 1, 1) * mean
                         + p["fc_b"].reshape(1, C, 1, 1))                # grouped 1x1 + sigmoid
    xg = jnp.where(x > thr, jnp.zeros_like(x), x)                        # bilinear of 1x1 = const
    x_ft = jnp.fft.rfft2(xg)

    def spectral(xslice, wr, wi, lrT, liT, br, bi):
        w = wr + 1j * wi                                                 # (C, m1, m2)
        lin = (lrT + 1j * liT).T                                         # (C, D)
        t = xslice * w[None]                                             # bcxy,cxy->bcxy
        o = (t[:, :, None] * lin[None, :, :, None, None]).sum(axis=1)    # bchw,cd->bdhw
        return o + (br + 1j * bi).reshape(1, D, 1, 1)

    out_ft = jnp.zeros((B, D, H, W // 2 + 1), dtype=jnp.complex64)
    out_ft = out_ft.at[:, :, :modes1, :modes2].set(
        spectral(x_ft[:, :, :modes1, :modes2],
                 p["w1r"], p["w1i"], p["l1rT"], p["l1iT"], p["b1r"], p["b1i"]))
    out_ft = out_ft.at[:, :, H - modes1:, :modes2].set(
        spectral(x_ft[:, :, H - modes1:, :modes2],
                 p["w2r"], p["w2i"], p["l2rT"], p["l2iT"], p["b2r"], p["b2i"]))
    x1 = jnp.fft.irfft2(out_ft, s=(H, W))

    x2 = (p["w_conv"][None, :, :, None, None] * x[:, None]).sum(axis=2)  # 1x1 conv
    x2 = x2 + p["w_bias"].reshape(1, D, 1, 1)
    return jax.nn.gelu(x1 + x2, approximate=False)


def init_params(key, C, D, m1, m2):
    ks = jax.random.split(key, 18)
    scale = 1.0 / C
    u = lambda k, s: scale * jax.random.uniform(k, s, jnp.float32)
    n = lambda k, s: jax.random.normal(k, s, jnp.float32)
    return {
        "fc_w": n(ks[0], (C, 1)) * 0.5,
        "fc_b": n(ks[1], (C, 1)) * 0.5,
        "w1r": u(ks[2], (C, m1, m2)), "w1i": u(ks[3], (C, m1, m2)),
        "w2r": u(ks[4], (C, m1, m2)), "w2i": u(ks[5], (C, m1, m2)),
        # linear weights stored pre-transposed as (D, C): linear[c, d] = lT[d, c]
        "l1rT": n(ks[6], (D, C)), "l1iT": n(ks[7], (D, C)),
        "l2rT": n(ks[8], (D, C)), "l2iT": n(ks[9], (D, C)),
        "b1r": n(ks[10], (D, 1)), "b1i": n(ks[11], (D, 1)),
        "b2r": n(ks[12], (D, 1)), "b2i": n(ks[13], (D, 1)),
        "w_conv": n(ks[14], (D, C)) * (1.0 / np.sqrt(C)),
        "w_bias": n(ks[15], (D, 1)) * 0.1,
    }


if __name__ == "__main__":
    B, C, D = 2, 4, 4          # out_channels must equal in_channels (module writes the
                               # D-channel spectral result into an in_channels buffer)
    size = 32                  # size > 16 -> full=False branch; AvgPool(1,32,32) -> 1x1
    m1, m2 = 8, 8              # modes1 <= H/2, modes2 <= W//2+1

    key = jax.random.PRNGKey(0)
    kx, kp = jax.random.split(key)
    x = jax.random.normal(kx, (B, C, size, size), jnp.float32)
    params = init_params(kp, C, D, m1, m2)
    packed = pack_ffo_params(params, B, size, size, m1, m2)   # one-time packing

    out = jax.block_until_ready(ffo_forward(x, packed))

    ref = ffo_reference(x, params, m1, m2)
    # atol absorbs bf16 rounding of the partial-DFT matmuls (same numerics as the
    # default MXU low-precision pass) relative to the XLA FFT used by the reference;
    # any structural bug would be O(1).
    np.testing.assert_allclose(np.asarray(out), np.asarray(ref), rtol=2e-2, atol=5e-2)

    print("KERNEL_OK")
</pallas_src>

<mosaic_0001>
module attributes {stable_mosaic.version = 11 : i64} {
  func.func @_ffo_corner_kernel(%arg0: i32, %arg1: memref<8x1024xf32, #tpu.memory_space<vmem>>, %arg2: memref<8x2xf32, #tpu.memory_space<vmem>>, %arg3: memref<1x1024x128xbf16, #tpu.memory_space<vmem>>, %arg4: memref<1x8x512xf32, #tpu.memory_space<vmem>>, %arg5: memref<1x16x8xf32, #tpu.memory_space<vmem>>, %arg6: memref<1x128x1024xbf16, #tpu.memory_space<vmem>>, %arg7: memref<8x8xf32, #tpu.memory_space<vmem>>, %arg8: memref<8x1024xf32, #tpu.memory_space<vmem>>, %arg9: memref<8x1024xf32, #tpu.memory_space<vmem>>, %arg10: memref<8x1024xbf16, #tpu.memory_space<vmem>>, %arg11: memref<8x1024xf32, #tpu.memory_space<vmem>>) attributes {dimension_semantics = [#tpu.dimension_semantics<arbitrary>], iteration_bounds = array<i64: 2>, scalar_prefetch = 0 : i64, scratch_operands = 2 : i64, tpu.core_type = #tpu.core_type<tc>, window_params = [{pipeline_mode = #tpu.pipeline_mode<synchronous>, transform_indices = @transform_0, window_bounds = array<i64: 8, 1024>}, {pipeline_mode = #tpu.pipeline_mode<synchronous>, transform_indices = @transform_1, window_bounds = array<i64: 8, 2>}, {transform_indices = @transform_2, window_bounds = array<i64: 1, 1024, 128>}, {transform_indices = @transform_3, window_bounds = array<i64: 1, 8, 512>}, {transform_indices = @transform_4, window_bounds = array<i64: 1, 16, 8>}, {transform_indices = @transform_5, window_bounds = array<i64: 1, 128, 1024>}, {pipeline_mode = #tpu.pipeline_mode<synchronous>, transform_indices = @transform_6, window_bounds = array<i64: 8, 8>}, {pipeline_mode = #tpu.pipeline_mode<synchronous>, transform_indices = @transform_7, window_bounds = array<i64: 8, 1024>}, {pipeline_mode = #tpu.pipeline_mode<synchronous>, transform_indices = @transform_8, window_bounds = array<i64: 8, 1024>}]} {
    %c0_i32 = arith.constant 0 : i32
    %0 = arith.cmpi eq, %arg0, %c0_i32 : i32
    %1 = arith.extui %0 : i1 to i32
    %c0_i32_0 = arith.constant 0 : i32
    %2 = arith.cmpi ne, %1, %c0_i32_0 : i32
    scf.if %2 {
      %c0_24 = arith.constant 0 : index
      %c0_25 = arith.constant 0 : index
      %37 = vector.load %arg1[%c0_24, %c0_25] : memref<8x1024xf32, #tpu.memory_space<vmem>>, vector<8x1024xf32>
      %cst_26 = arith.constant dense<0.000000e+00> : vector<8xf32>
      %38 = vector.multi_reduction <add>, %37, %cst_26 [1] : vector<8x1024xf32> to vector<8xf32>
      %39 = vector.shape_cast %38 : vector<8xf32> to vector<8x1xf32>
      %cst_27 = arith.constant 1.024000e+03 : f32
      %40 = vector.broadcast %cst_27 : f32 to vector<8x1xf32>
      %41 = arith.divf %39, %40 : vector<8x1xf32>
      %c0_28 = arith.constant 0 : index
      %c0_29 = arith.constant 0 : index
      %42 = vector.load %arg2[%c0_28, %c0_29] : memref<8x2xf32, #tpu.memory_space<vmem>>, vector<8x1xf32>
      %43 = arith.mulf %42, %41 : vector<8x1xf32>
      %c0_30 = arith.constant 0 : index
      %c1 = arith.constant 1 : index
      %44 = vector.load %arg2[%c0_30, %c1] : memref<8x2xf32, #tpu.memory_space<vmem>>, vector<8x1xf32>
      %45 = arith.addf %43, %44 : vector<8x1xf32>
      %46 = arith.negf %45 : vector<8x1xf32>
      %47 = math.exp %46 : vector<8x1xf32>
      %cst_31 = arith.constant 1.000000e+00 : f32
      %48 = vector.broadcast %cst_31 : f32 to vector<8x1xf32>
      %49 = arith.addf %48, %47 : vector<8x1xf32>
      %50 = arith.divf %48, %49 : vector<8x1xf32>
      %51 = vector.broadcast %50 : vector<8x1xf32> to vector<8x1024xf32>
      %52 = arith.cmpf ogt, %37, %51 : vector<8x1024xf32>
      %cst_32 = arith.constant 0.000000e+00 : f32
      %53 = vector.broadcast %cst_32 : f32 to vector<8x1024xf32>
      %54 = arith.select %52, %53, %37 : vector<8x1024xi1>, vector<8x1024xf32>
      %55 = arith.truncf %54 : vector<8x1024xf32> to vector<8x1024xbf16>
      %c0_33 = arith.constant 0 : index
      %c0_34 = arith.constant 0 : index
      %56 = vector.load %arg10[%c0_33, %c0_34] : memref<8x1024xbf16, #tpu.memory_space<vmem>>, vector<8x1024xbf16>
      tpu.vector_store %arg10[%c0_33, %c0_34], %55 {strides = array<i32>} : memref<8x1024xbf16, #tpu.memory_space<vmem>>, vector<8x1024xbf16>,
      %cst_35 = arith.constant 0.000000e+00 : f32
      %57 = vector.broadcast %cst_35 : f32 to vector<8x1024xf32>
      %c0_36 = arith.constant 0 : index
      %c0_37 = arith.constant 0 : index
      %58 = vector.load %arg11[%c0_36, %c0_37] : memref<8x1024xf32, #tpu.memory_space<vmem>>, vector<8x1024xf32>
      tpu.vector_store %arg11[%c0_36, %c0_37], %57 {strides = array<i32>} : memref<8x1024xf32, #tpu.memory_space<vmem>>, vector<8x1024xf32>,
    } else {
    }
    %c0 = arith.constant 0 : index
    %c0_1 = arith.constant 0 : index
    %3 = vector.load %arg10[%c0, %c0_1] : memref<8x1024xbf16, #tpu.memory_space<vmem>>, vector<8x1024xbf16>
    %c0_2 = arith.constant 0 : index
    %c0_3 = arith.constant 0 : index
    %c0_4 = arith.constant 0 : index
    %4 = vector.load %arg3[%c0_2, %c0_3, %c0_4] : memref<1x1024x128xbf16, #tpu.memory_space<vmem>>, vector<1x1024x128xbf16>
    %5 = vector.shape_cast %4 : vector<1x1024x128xbf16> to vector<1024x128xbf16>
    %cst = arith.constant dense<0.000000e+00> : vector<8x128xf32>
    %6 = tpu.matmul %3, %5, %cst {dimension_numbers = #tpu.dot_dimension_numbers<[1], [0], [0], [1], [0, 0, 1, 1], [], []>} : vector<8x1024xbf16>, vector<1024x128xbf16>, vector<8x128xf32> -> vector<8x128xf32>
    %c64_i32 = arith.constant 64 : i32
    %7 = tpu.dynamic_rotate %6 by %c64_i32 dim 1 : vector<8x128xf32>, i32 -> vector<8x128xf32>
    %c0_5 = arith.constant 0 : index
    %c0_6 = arith.constant 0 : index
    %c0_7 = arith.constant 0 : index
    %8 = vector.load %arg4[%c0_5, %c0_6, %c0_7] : memref<1x8x512xf32, #tpu.memory_space<vmem>>, vector<1x8x512xf32>
    %9 = vector.shape_cast %8 : vector<1x8x512xf32> to vector<8x512xf32>
    %10 = vector.extract_strided_slice %9 {offsets = [0, 0], sizes = [8, 128], strides = [1, 1]} : vector<8x512xf32> to vector<8x128xf32>
    %11 = arith.mulf %6, %10 : vector<8x128xf32>
    %12 = vector.extract_strided_slice %9 {offsets = [0, 128], sizes = [8, 128], strides = [1, 1]} : vector<8x512xf32> to vector<8x128xf32>
    %13 = arith.mulf %7, %12 : vector<8x128xf32>
    %14 = arith.addf %11, %13 : vector<8x128xf32>
    %15 = vector.extract_strided_slice %9 {offsets = [0, 256], sizes = [8, 128], strides = [1, 1]} : vector<8x512xf32> to vector<8x128xf32>
    %16 = arith.mulf %7, %15 : vector<8x128xf32>
    %17 = vector.extract_strided_slice %9 {offsets = [0, 384], sizes = [8, 128], strides = [1, 1]} : vector<8x512xf32> to vector<8x128xf32>
    %18 = arith.mulf %6, %17 : vector<8x128xf32>
    %19 = arith.addf %16, %18 : vector<8x128xf32>
    %c0_8 = arith.constant 0 : index
    %c0_9 = arith.constant 0 : index
    %c0_10 = arith.constant 0 : index
    %20 = vector.load %arg5[%c0_8, %c0_9, %c0_10] : memref<1x16x8xf32, #tpu.memory_space<vmem>>, vector<1x8x8xf32>
    %21 = vector.shape_cast %20 : vector<1x8x8xf32> to vector<8x8xf32>
    %cst_11 = arith.constant dense<0.000000e+00> : vector<8x128xf32>
    %22 = tpu.matmul %21, %14, %cst_11 {dimension_numbers = #tpu.dot_dimension_numbers<[1], [0], [0], [1], [0, 0, 1, 1], [], []>} : vector<8x8xf32>, vector<8x128xf32>, vector<8x128xf32> -> vector<8x128xf32>
    %c0_12 = arith.constant 0 : index
    %c8 = arith.constant 8 : index
    %c0_13 = arith.constant 0 : index
    %23 = vector.load %arg5[%c0_12, %c8, %c0_13] : memref<1x16x8xf32, #tpu.memory_space<vmem>>, vector<1x8x8xf32>
    %24 = vector.shape_cast %23 : vector<1x8x8xf32> to vector<8x8xf32>
    %cst_14 = arith.constant dense<0.000000e+00> : vector<8x128xf32>
    %25 = tpu.matmul %24, %19, %cst_14 {dimension_numbers = #tpu.dot_dimension_numbers<[1], [0], [0], [1], [0, 0, 1, 1], [], []>} : vector<8x8xf32>, vector<8x128xf32>, vector<8x128xf32> -> vector<8x128xf32>
    %26 = arith.addf %22, %25 : vector<8x128xf32>
    %c0_15 = arith.constant 0 : index
    %c0_16 = arith.constant 0 : index
    %27 = vector.load %arg11[%c0_15, %c0_16] : memref<8x1024xf32, #tpu.memory_space<vmem>>, vector<8x1024xf32>
    %28 = arith.truncf %26 : vector<8x128xf32> to vector<8x128xbf16>
    %c0_17 = arith.constant 0 : index
    %c0_18 = arith.constant 0 : index
    %c0_19 = arith.constant 0 : index
    %29 = vector.load %arg6[%c0_17, %c0_18, %c0_19] : memref<1x128x1024xbf16, #tpu.memory_space<vmem>>, vector<1x128x1024xbf16>
    %30 = vector.shape_cast %29 : vector<1x128x1024xbf16> to vector<128x1024xbf16>
    %cst_20 = arith.constant dense<0.000000e+00> : vector<8x1024xf32>
    %31 = tpu.matmul %28, %30, %cst_20 {dimension_numbers = #tpu.dot_dimension_numbers<[1], [0], [0], [1], [0, 0, 1, 1], [], []>} : vector<8x128xbf16>, vector<128x1024xbf16>, vector<8x1024xf32> -> vector<8x1024xf32>
    %32 = arith.addf %27, %31 : vector<8x1024xf32>
    %c0_21 = arith.constant 0 : index
    %c0_22 = arith.constant 0 : index
    %33 = vector.load %arg11[%c0_21, %c0_22] : memref<8x1024xf32, #tpu.memory_space<vmem>>, vector<8x1024xf32>
    tpu.vector_store %arg11[%c0_21, %c0_22], %32 {strides = array<i32>} : memref<8x1024xf32, #tpu.memory_space<vmem>>, vector<8x1024xf32>,
    %c1_i32 = arith.constant 1 : i32
    %34 = arith.cmpi eq, %arg0, %c1_i32 : i32
    %35 = arith.extui %34 : i1 to i32
    %c0_i32_23 = arith.constant 0 : i32
    %36 = arith.cmpi ne, %35, %c0_i32_23 : i32
    scf.if %36 {
      %c0_24 = arith.constant 0 : index
      %c0_25 = arith.constant 0 : index
      %37 = vector.load %arg7[%c0_24, %c0_25] : memref<8x8xf32, #tpu.memory_space<vmem>>, vector<8x8xf32>
      %c0_26 = arith.constant 0 : index
      %c0_27 = arith.constant 0 : index
      %38 = vector.load %arg1[%c0_26, %c0_27] : memref<8x1024xf32, #tpu.memory_space<vmem>>, vector<8x1024xf32>
      %cst_28 = arith.constant dense<0.000000e+00> : vector<8x1024xf32>
      %39 = tpu.matmul %37, %38, %cst_28 {dimension_numbers = #tpu.dot_dimension_numbers<[1], [0], [0], [1], [0, 0, 1, 1], [], []>} : vector<8x8xf32>, vector<8x1024xf32>, vector<8x1024xf32> -> vector<8x1024xf32>
      %c0_29 = arith.constant 0 : index
      %c0_30 = arith.constant 0 : index
      %40 = vector.load %arg11[%c0_29, %c0_30] : memref<8x1024xf32, #tpu.memory_space<vmem>>, vector<8x1024xf32>
      %41 = arith.addf %40, %39 : vector<8x1024xf32>
      %c0_31 = arith.constant 0 : index
      %c0_32 = arith.constant 0 : index
      %42 = vector.load %arg8[%c0_31, %c0_32] : memref<8x1024xf32, #tpu.memory_space<vmem>>, vector<8x1024xf32>
      %43 = arith.addf %41, %42 : vector<8x1024xf32>
      %cst_33 = arith.constant 5.000000e-01 : f32
      %44 = vector.broadcast %cst_33 : f32 to vector<8x1024xf32>
      %45 = arith.mulf %44, %43 : vector<8x1024xf32>
      %cst_34 = arith.constant 0.707106769 : f32
      %46 = vector.broadcast %cst_34 : f32 to vector<8x1024xf32>
      %47 = arith.mulf %43, %46 : vector<8x1024xf32>
      %48 = math.erf %47 : vector<8x1024xf32>
      %cst_35 = arith.constant 1.000000e+00 : f32
      %49 = vector.broadcast %cst_35 : f32 to vector<8x1024xf32>
      %50 = arith.addf %49, %48 : vector<8x1024xf32>
      %51 = arith.mulf %45, %50 : vector<8x1024xf32>
      %c0_36 = arith.constant 0 : index
      %c0_37 = arith.constant 0 : index
      %52 = vector.load %arg9[%c0_36, %c0_37] : memref<8x1024xf32, #tpu.memory_space<vmem>>, vector<8x1024xf32>
      tpu.vector_store %arg9[%c0_36, %c0_37], %51 {strides = array<i32>} : memref<8x1024xf32, #tpu.memory_space<vmem>>, vector<8x1024xf32>,
    } else {
    }
    return
  }
  func.func @transform_0(%arg0: i32) -> (i32, i32) {
    %c0_i32 = arith.constant 0 : i32
    %c0_i32_0 = arith.constant 0 : i32
    %c0_i32_1 = arith.constant 0 : i32
    return %c0_i32, %c0_i32_0 : i32, i32
  }
  func.func @transform_1(%arg0: i32) -> (i32, i32) {
    %c0_i32 = arith.constant 0 : i32
    %c0_i32_0 = arith.constant 0 : i32
    %c0_i32_1 = arith.constant 0 : i32
    return %c0_i32, %c0_i32_0 : i32, i32
  }
  func.func @transform_2(%arg0: i32) -> (i32, i32, i32) {
    %c0_i32 = arith.constant 0 : i32
    %c0_i32_0 = arith.constant 0 : i32
    %c0_i32_1 = arith.constant 0 : i32
    return %arg0, %c0_i32, %c0_i32_0 : i32, i32, i32
  }
  func.func @transform_3(%arg0: i32) -> (i32, i32, i32) {
    %c0_i32 = arith.constant 0 : i32
    %c0_i32_0 = arith.constant 0 : i32
    %c0_i32_1 = arith.constant 0 : i32
    return %arg0, %c0_i32, %c0_i32_0 : i32, i32, i32
  }
  func.func @transform_4(%arg0: i32) -> (i32, i32, i32) {
    %c0_i32 = arith.constant 0 : i32
    %c0_i32_0 = arith.constant 0 : i32
    %c0_i32_1 = arith.constant 0 : i32
    return %arg0, %c0_i32, %c0_i32_0 : i32, i32, i32
  }
  func.func @transform_5(%arg0: i32) -> (i32, i32, i32) {
    %c0_i32 = arith.constant 0 : i32
    %c0_i32_0 = arith.constant 0 : i32
    %c0_i32_1 = arith.constant 0 : i32
    return %arg0, %c0_i32, %c0_i32_0 : i32, i32, i32
  }
  func.func @transform_6(%arg0: i32) -> (i32, i32) {
    %c0_i32 = arith.constant 0 : i32
    %c0_i32_0 = arith.constant 0 : i32
    %c0_i32_1 = arith.constant 0 : i32
    return %c0_i32, %c0_i32_0 : i32, i32
  }
  func.func @transform_7(%arg0: i32) -> (i32, i32) {
    %c0_i32 = arith.constant 0 : i32
    %c0_i32_0 = arith.constant 0 : i32
    %c0_i32_1 = arith.constant 0 : i32
    return %c0_i32, %c0_i32_0 : i32, i32
  }
  func.func @transform_8(%arg0: i32) -> (i32, i32) {
    %c0_i32 = arith.constant 0 : i32
    %c0_i32_0 = arith.constant 0 : i32
    %c0_i32_1 = arith.constant 0 : i32
    return %c0_i32, %c0_i32_0 : i32, i32
  }
}

</mosaic_0001>

<llo_original>
// kernel: ffo_forward.1
$region0: #{ffo_forward.1}
  #allocation0 [shape = 'u32[]', space=smem, size = 0x4, offset = 0x4, fixed_abs, tag = 'smem constant byte address 0x4 - core index']
  #allocation1 [shape = 'u32[144,128]{1,0:T(1,128)}', space=vmem, size = 0x12000, scoped, tag = 'internal scratch']
  #allocation2 [shape = 'bf16[8,1024]{1,0:T(8,128)(2,1)}', space=vmem, size = 0x4000, scoped, tag = 'scratch operand']
  #allocation3 [shape = 'f32[8,1024]{1,0:T(8,128)}', space=vmem, size = 0x8000, scoped, tag = 'scratch operand']
  %s0 = inlined_call_operand.vmem [shape: f32[8,1024], index: 0, kind: input, shape index: {}]
  %s1 = inlined_call_operand.vmem [shape: f32[8,2], index: 1, kind: input, shape index: {}]
  %s2 = inlined_call_operand.hbm [shape: bf16[2,1024,128], index: 2, kind: input, shape index: {}]
  %s3 = inlined_call_operand.vmem [shape: f32[2,8,512], index: 3, kind: input, shape index: {}]
  %s4 = inlined_call_operand.vmem [shape: f32[2,16,8], index: 4, kind: input, shape index: {}]
  %s5 = inlined_call_operand.hbm [shape: bf16[2,128,1024], index: 5, kind: input, shape index: {}]
  %s6 = inlined_call_operand.vmem [shape: f32[8,8], index: 6, kind: input, shape index: {}]
  %s7 = inlined_call_operand.vmem [shape: f32[8,1024], index: 7, kind: input, shape index: {}]
  %s8 = inlined_call_operand.vmem [shape: f32[8,1024], index: 8, kind: output, shape index: {}]
  %s9 = sld [smem:[#allocation0]]
  $region81: #{ffo_forward.1} parent=0
    _
  %s11 = ssub.s32 1, %s9
  %s12 = scalar_select 0, %s11, %s9
  $region1: #{ffo_forward.1} parent=0
    #allocation4 [shape = 'u8[524288]{0}', space=vmem, size = 0x80000, scoped, tag = 'input window, operand 2']
    #allocation5 [shape = 's32[2]{0}', space=sflag, size = 0x8, scoped, tag = 'scoped memory for ffo_forward.1']
    #allocation6 [shape = 'u8[524288]{0}', space=vmem, size = 0x80000, scoped, tag = 'input window, operand 5']
    #allocation7 [shape = 's32[2]{0}', space=sflag, size = 0x8, scoped, tag = 'scoped memory for ffo_forward.1']
    %13 = vsyncpa [#allocation5], 0
    %s14 = scalar_lea.sflag [#allocation5], 1
    %15 = vsyncpa %s14, 0
    %16 = vsyncpa [#allocation7], 0
    %s17 = scalar_lea.sflag [#allocation7], 1
    %18 = vsyncpa %s17, 0
    loop: start=0, step=1, limit=4
    $region2: #{ffo_forward.1} parent=1 // loop_pre_header
      _
    $region3: #{ffo_forward.1} parent=1 // loop_header
      %s20 = sphi 0, %s24
      %p21 = scmp.ge.s32.totalorder %s20, 4
      %s28 = sphi 0, %s28
      %s30 = sphi 0, %s28
      %s31 = sphi 0, %s30
      %s45 = sphi 0, %s31
      %s49 = sphi 0, %s49
      %s51 = sphi 0, %s49
      %s52 = sphi 0, %s51
      %s66 = sphi 0, %s52
      %s72 = sphi 0, %s74
      %s75 = sphi 0, %s72
      %s76 = sphi 0, %s75
      %s92 = sphi 0, %s76
      %s98 = sphi 0, %s100
      %s101 = sphi 0, %s98
      %s102 = sphi 0, %s101
      %s118 = sphi 0, %s102
      %s124 = sphi 0, %s126
      %s127 = sphi 0, %s124
      %s128 = sphi 0, %s127
      %s144 = sphi 0, %s128
      %s150 = sphi 0, %s152
      %s153 = sphi 0, %s150
      %s154 = sphi 0, %s153
      %s170 = sphi 0, %s154
      %s174 = sphi 0, %s174
      %s176 = sphi 0, %s174
      %s177 = sphi 0, %s176
      %s191 = sphi 0, %s177
      %s195 = sphi 0, %s195
      %s197 = sphi 0, %s195
      %s198 = sphi 0, %s197
      %s212 = sphi 0, %s198
      %s216 = sphi 0, %s216
      %s218 = sphi 0, %s216
      %s219 = sphi 0, %s218
      %s233 = sphi 0, %s219
    $region4: #{ffo_forward.1} parent=1 // loop_header_branch
      %23 = sbr.rel (%p21) target = $region8
    $region5: #{ffo_forward.1} parent=1 // loop_body
      %s25 = ssub.s32 %s20, 1
      %s26 = ssub.s32 %s20, 2
      %s27 = sadd.s32 %s20, 1
      %s29 = sadd.s32 %s28, 1
      %p32 = scmp.eq.s32.totalorder %s20, 1
      %p33 = scmp.ne.s32.totalorder %s28, %s30
      %p34 = scmp.eq.s32.totalorder %s20, 0
      %p35 = por %p33, %p34
      %p36 = scmp.ne.s32.totalorder %s28, %s30
      %p37 = scmp.eq.s32.totalorder %s25, 1
      %p38 = por %p36, %p37
      %p39 = scmp.ne.s32.totalorder %s30, %s31
      %p40 = scmp.eq.s32.totalorder %s25, 0
      %p41 = por %p39, %p40
      %p42 = scmp.ne.s32.totalorder %s30, %s31
      %p43 = scmp.eq.s32.totalorder %s26, 1
      %p44 = por %p42, %p43
      %p46 = scmp.ne.s32.totalorder %s31, %s45
      %p47 = scmp.eq.s32.totalorder %s26, 0
      %p48 = por %p46, %p47
      %s50 = sadd.s32 %s49, 1
      %p53 = scmp.eq.s32.totalorder %s20, 1
      %p54 = scmp.ne.s32.totalorder %s49, %s51
      %p55 = scmp.eq.s32.totalorder %s20, 0
      %p56 = por %p54, %p55
      %p57 = scmp.ne.s32.totalorder %s49, %s51
      %p58 = scmp.eq.s32.totalorder %s25, 1
      %p59 = por %p57, %p58
      %p60 = scmp.ne.s32.totalorder %s51, %s52
      %p61 = scmp.eq.s32.totalorder %s25, 0
      %p62 = por %p60, %p61
      %p63 = scmp.ne.s32.totalorder %s51, %s52
      %p64 = scmp.eq.s32.totalorder %s26, 1
      %p65 = por %p63, %p64
      %p67 = scmp.ne.s32.totalorder %s52, %s66
      %p68 = scmp.eq.s32.totalorder %s26, 0
      %p69 = por %p67, %p68
      %s70 = ssub.s32 %s20, %s27
      %p71 = scmp.eq.s32.totalorder %s70, 0
      %s73 = sadd.s32 %s72, 1
      %s74 = scalar_select %p71, %s72, %s73
      %p77 = pneg %p71
      %p78 = scmp.eq.s32.totalorder %s20, 1
      %p79 = por %p77, %p78
      %p80 = scmp.ne.s32.totalorder %s72, %s75
      %p81 = scmp.eq.s32.totalorder %s20, 0
      %p82 = por %p80, %p81
      %p83 = scmp.ne.s32.totalorder %s72, %s75
      %p84 = scmp.eq.s32.totalorder %s25, 1
      %p85 = por %p83, %p84
      %p86 = scmp.ne.s32.totalorder %s75, %s76
      %p87 = scmp.eq.s32.totalorder %s25, 0
      %p88 = por %p86, %p87
      %p89 = scmp.ne.s32.totalorder %s75, %s76
      %p90 = scmp.eq.s32.totalorder %s26, 1
      %p91 = por %p89, %p90
      %p93 = scmp.ne.s32.totalorder %s76, %s92
      %p94 = scmp.eq.s32.totalorder %s26, 0
      %p95 = por %p93, %p94
      %s96 = ssub.s32 %s20, %s27
      %p97 = scmp.eq.s32.totalorder %s96, 0
      %s99 = sadd.s32 %s98, 1
      %s100 = scalar_select %p97, %s98, %s99
      %p103 = pneg %p97
      %p104 = scmp.eq.s32.totalorder %s20, 1
      %p105 = por %p103, %p104
      %p106 = scmp.ne.s32.totalorder %s98, %s101
      %p107 = scmp.eq.s32.totalorder %s20, 0
      %p108 = por %p106, %p107
      %p109 = scmp.ne.s32.totalorder %s98, %s101
      %p110 = scmp.eq.s32.totalorder %s25, 1
      %p111 = por %p109, %p110
      %p112 = scmp.ne.s32.totalorder %s101, %s102
      %p113 = scmp.eq.s32.totalorder %s25, 0
      %p114 = por %p112, %p113
      %p115 = scmp.ne.s32.totalorder %s101, %s102
      %p116 = scmp.eq.s32.totalorder %s26, 1
      %p117 = por %p115, %p116
      %p119 = scmp.ne.s32.totalorder %s102, %s118
      %p120 = scmp.eq.s32.totalorder %s26, 0
      %p121 = por %p119, %p120
      %s122 = ssub.s32 %s20, %s27
      %p123 = scmp.eq.s32.totalorder %s122, 0
      %s125 = sadd.s32 %s124, 1
      %s126 = scalar_select %p123, %s124, %s125
      %p129 = pneg %p123
      %p130 = scmp.eq.s32.totalorder %s20, 1
      %p131 = por %p129, %p130
      %p132 = scmp.ne.s32.totalorder %s124, %s127
      %p133 = scmp.eq.s32.totalorder %s20, 0
      %p134 = por %p132, %p133
      %p135 = scmp.ne.s32.totalorder %s124, %s127
      %p136 = scmp.eq.s32.totalorder %s25, 1
      %p137 = por %p135, %p136
      %p138 = scmp.ne.s32.totalorder %s127, %s128
      %p139 = scmp.eq.s32.totalorder %s25, 0
      %p140 = por %p138, %p139
      %p141 = scmp.ne.s32.totalorder %s127, %s128
      %p142 = scmp.eq.s32.totalorder %s26, 1
      %p143 = por %p141, %p142
      %p145 = scmp.ne.s32.totalorder %s128, %s144
      %p146 = scmp.eq.s32.totalorder %s26, 0
      %p147 = por %p145, %p146
      %s148 = ssub.s32 %s20, %s27
      %p149 = scmp.eq.s32.totalorder %s148, 0
      %s151 = sadd.s32 %s150, 1
      %s152 = scalar_select %p149, %s150, %s151
      %p155 = pneg %p149
      %p156 = scmp.eq.s32.totalorder %s20, 1
      %p157 = por %p155, %p156
      %p158 = scmp.ne.s32.totalorder %s150, %s153
      %p159 = scmp.eq.s32.totalorder %s20, 0
      %p160 = por %p158, %p159
      %p161 = scmp.ne.s32.totalorder %s150, %s153
      %p162 = scmp.eq.s32.totalorder %s25, 1
      %p163 = por %p161, %p162
      %p164 = scmp.ne.s32.totalorder %s153, %s154
      %p165 = scmp.eq.s32.totalorder %s25, 0
      %p166 = por %p164, %p165
      %p167 = scmp.ne.s32.totalorder %s153, %s154
      %p168 = scmp.eq.s32.totalorder %s26, 1
      %p169 = por %p167, %p168
      %p171 = scmp.ne.s32.totalorder %s154, %s170
      %p172 = scmp.eq.s32.totalorder %s26, 0
      %p173 = por %p171, %p172
      %s175 = sadd.s32 %s174, 1
      %p178 = scmp.eq.s32.totalorder %s20, 1
      %p179 = scmp.ne.s32.totalorder %s174, %s176
      %p180 = scmp.eq.s32.totalorder %s20, 0
      %p181 = por %p179, %p180
      %p182 = scmp.ne.s32.totalorder %s174, %s176
      %p183 = scmp.eq.s32.totalorder %s25, 1
      %p184 = por %p182, %p183
      %p185 = scmp.ne.s32.totalorder %s176, %s177
      %p186 = scmp.eq.s32.totalorder %s25, 0
      %p187 = por %p185, %p186
      %p188 = scmp.ne.s32.totalorder %s176, %s177
      %p189 = scmp.eq.s32.totalorder %s26, 1
      %p190 = por %p188, %p189
      %p192 = scmp.ne.s32.totalorder %s177, %s191
      %p193 = scmp.eq.s32.totalorder %s26, 0
      %p194 = por %p192, %p193
      %s196 = sadd.s32 %s195, 1
      %p199 = scmp.eq.s32.totalorder %s20, 1
      %p200 = scmp.ne.s32.totalorder %s195, %s197
      %p201 = scmp.eq.s32.totalorder %s20, 0
      %p202 = por %p200, %p201
      %p203 = scmp.ne.s32.totalorder %s195, %s197
      %p204 = scmp.eq.s32.totalorder %s25, 1
      %p205 = por %p203, %p204
      %p206 = scmp.ne.s32.totalorder %s197, %s198
      %p207 = scmp.eq.s32.totalorder %s25, 0
      %p208 = por %p206, %p207
      %p209 = scmp.ne.s32.totalorder %s197, %s198
      %p210 = scmp.eq.s32.totalorder %s26, 1
      %p211 = por %p209, %p210
      %p213 = scmp.ne.s32.totalorder %s198, %s212
      %p214 = scmp.eq.s32.totalorder %s26, 0
      %p215 = por %p213, %p214
      %s217 = sadd.s32 %s216, 1
      %p220 = scmp.eq.s32.totalorder %s20, 1
      %p221 = scmp.ne.s32.totalorder %s216, %s218
      %p222 = scmp.eq.s32.totalorder %s20, 0
      %p223 = por %p221, %p222
      %p224 = scmp.ne.s32.totalorder %s216, %s218
      %p225 = scmp.eq.s32.totalorder %s25, 1
      %p226 = por %p224, %p225
      %p227 = scmp.ne.s32.totalorder %s218, %s219
      %p228 = scmp.eq.s32.totalorder %s25, 0
      %p229 = por %p227, %p228
      %p230 = scmp.ne.s32.totalorder %s218, %s219
      %p231 = scmp.eq.s32.totalorder %s26, 1
      %p232 = por %p230, %p231
      %p234 = scmp.ne.s32.totalorder %s219, %s233
      %p235 = scmp.eq.s32.totalorder %s26, 0
      %p236 = por %p234, %p235
      %p237 = scmp.le.s32.totalorder 1, %s20
      %p238 = scmp.lt.s32.totalorder %s20, 3
      %p239 = pnand %p237, %p238
      %p240 = pneg %p239
      // Predicated region
      $region9: #{ffo_forward.1} parent=5 // pred_check
        _
      $region10: #{ffo_forward.1} parent=5 // pred_check_branch
        %242 = sbr.rel (%p239) target = $region12
      $region11: #{ffo_forward.1} parent=5 // pred_region
        %s243 = ssub.s32 %s20, 1
        // Predicated region
        $region13: #{ffo_forward.1} parent=11 // pred_check
          %p244 = pneg %p41
        $region14: #{ffo_forward.1} parent=11 // pred_check_branch
          %246 = sbr.rel (%p244) target = $region16
        $region15: #{ffo_forward.1} parent=11 // pred_region
          _
        $region16: #{ffo_forward.1} parent=11 // pred_fallthru
          _
        // Predicated region
        $region17: #{ffo_forward.1} parent=11 // pred_check
          %p247 = pneg %p62
        $region18: #{ffo_forward.1} parent=11 // pred_check_branch
          %249 = sbr.rel (%p247) target = $region20
        $region19: #{ffo_forward.1} parent=11 // pred_region
          _
        $region20: #{ffo_forward.1} parent=11 // pred_fallthru
          _
        // Predicated region
        $region21: #{ffo_forward.1} parent=11 // pred_check
          %p250 = pneg %p187
        $region22: #{ffo_forward.1} parent=11 // pred_check_branch
          %252 = sbr.rel (%p250) target = $region24
        $region23: #{ffo_forward.1} parent=11 // pred_region
          _
        $region24: #{ffo_forward.1} parent=11 // pred_fallthru
          _
        // Predicated region
        $region25: #{ffo_forward.1} parent=11 // pred_check
          %p253 = pneg %p208
        $region26: #{ffo_forward.1} parent=11 // pred_check_branch
          %255 = sbr.rel (%p253) target = $region28
        $region27: #{ffo_forward.1} parent=11 // pred_region
          _
        $region28: #{ffo_forward.1} parent=11 // pred_fallthru
          _
      $region12: #{ffo_forward.1} parent=5 // pred_fallthru
        _
      %p256 = scmp.lt.s32.totalorder %s20, 2
      // Predicated region
      $region29: #{ffo_forward.1} parent=5 // pred_check
        %p257 = pneg %p256
      $region30: #{ffo_forward.1} parent=5 // pred_check_branch
        %259 = sbr.rel (%p257) target = $region32
      $region31: #{ffo_forward.1} parent=5 // pred_region
        // Predicated region
        $region33: #{ffo_forward.1} parent=31 // pred_check
          %p260 = pneg %p82
        $region34: #{ffo_forward.1} parent=31 // pred_check_branch
          %262 = sbr.rel (%p260) target = $region36
        $region35: #{ffo_forward.1} parent=31 // pred_region
          %s263 = sand.u32 %s72, 1
          %s264 = scalar_lea.sflag [#allocation5], %s263
          %s265 = sand.u32 %s72, 1
          %s266 = smul.addr %s265, 512
          %s267 = scalar_lea.vmem [#allocation4], %s266
          %s269 = ssub.s32 8192, 8192
          %270 = vsyncadd %s264, %s269
          %s271 = smul.addr %s20, 128
          %s272 = smul.addr %s271, 64
          %s273 = scalar_lea.hbm %s2, %s272
          %s274 = sshll.u32 %s267, 4
          %s275 = int_to_ptr.vmem [resolvable:$true] %s274
          %280 = dma.hbm_to_vmem [thread:$0]  %s273, 8192, %s275, %s264, 64, 64, 4
        $region36: #{ffo_forward.1} parent=31 // pred_fallthru
          _
        // Predicated region
        $region37: #{ffo_forward.1} parent=31 // pred_check
          %p281 = pneg %p108
        $region38: #{ffo_forward.1} parent=31 // pred_check_branch
          %283 = sbr.rel (%p281) target = $region40
        $region39: #{ffo_forward.1} parent=31 // pred_region
          %p284 = scmp.lt.s32.totalorder %s20, 1
          %s285 = scalar_select %p284, %s20, 1
          %s286 = smul.addr %s285, 4
          %s287 = smul.addr %s286, 8
          %s288 = scalar_lea.vmem %s3, %s287
        $region40: #{ffo_forward.1} parent=31 // pred_fallthru
          _
        // Predicated region
        $region41: #{ffo_forward.1} parent=31 // pred_check
          %p289 = pneg %p134
        $region42: #{ffo_forward.1} parent=31 // pred_check_branch
          %291 = sbr.rel (%p289) target = $region44
        $region43: #{ffo_forward.1} parent=31 // pred_region
          %p292 = scmp.lt.s32.totalorder %s20, 1
          %s293 = scalar_select %p292, %s20, 1
          %s294 = smul.addr %s293, 2
          %s295 = smul.addr %s294, 8
          %s296 = scalar_lea.vmem %s4, %s295
        $region44: #{ffo_forward.1} parent=31 // pred_fallthru
          _
        // Predicated region
        $region45: #{ffo_forward.1} parent=31 // pred_check
          %p297 = pneg %p160
        $region46: #{ffo_forward.1} parent=31 // pred_check_branch
          %299 = sbr.rel (%p297) target = $region48
        $region47: #{ffo_forward.1} parent=31 // pred_region
          %s300 = sand.u32 %s150, 1
          %s301 = scalar_lea.sflag [#allocation7], %s300
          %s302 = sand.u32 %s150, 1
          %s303 = smul.addr %s302, 512
          %s304 = scalar_lea.vmem [#allocation6], %s303
          %s306 = ssub.s32 8192, 8192
          %307 = vsyncadd %s301, %s306
          %s308 = smul.addr %s20, 128
          %s309 = smul.addr %s308, 64
          %s310 = scalar_lea.hbm %s5, %s309
          %s311 = sshll.u32 %s304, 4
          %s312 = int_to_ptr.vmem [resolvable:$true] %s311
          %317 = dma.hbm_to_vmem [thread:$0]  %s310, 8192, %s312, %s301, 512, 512, 32
        $region48: #{ffo_forward.1} parent=31 // pred_fallthru
          _
      $region32: #{ffo_forward.1} parent=5 // pred_fallthru
        _
      %p318 = scmp.le.s32.totalorder 1, %s20
      %p319 = scmp.lt.s32.totalorder %s20, 3
      %p320 = pnand %p318, %p319
      %p321 = pneg %p320
      // Predicated region
      $region49: #{ffo_forward.1} parent=5 // pred_check
        _
      $region50: #{ffo_forward.1} parent=5 // pred_check_branch
        %323 = sbr.rel (%p320) target = $region52
      $region51: #{ffo_forward.1} parent=5 // pred_region
        %s324 = ssub.s32 %s20, 1
        %s325 = sand.u32 %s75, 1
        %s326 = scalar_lea.sflag [#allocation5], %s325
        %s327 = sand.u32 %s75, 1
        %s328 = smul.addr %s327, 512
        %s329 = scalar_lea.vmem [#allocation4], %s328
        // Predicated region
        $region53: #{ffo_forward.1} parent=51 // pred_check
          %p330 = pneg %p88
        $region54: #{ffo_forward.1} parent=51 // pred_check_branch
          %332 = sbr.rel (%p330) target = $region56
        $region55: #{ffo_forward.1} parent=51 // pred_region
          %333 = dma.done %s326, 8192
        $region56: #{ffo_forward.1} parent=51 // pred_fallthru
          _
        %s334 = sand.u32 %s153, 1
        %s335 = scalar_lea.sflag [#allocation7], %s334
        %s336 = sand.u32 %s153, 1
        %s337 = smul.addr %s336, 512
        %s338 = scalar_lea.vmem [#allocation6], %s337
        // Predicated region
        $region57: #{ffo_forward.1} parent=51 // pred_check
          %p339 = pneg %p166
        $region58: #{ffo_forward.1} parent=51 // pred_check_branch
          %341 = sbr.rel (%p339) target = $region60
        $region59: #{ffo_forward.1} parent=51 // pred_region
          %342 = dma.done %s335, 8192
        $region60: #{ffo_forward.1} parent=51 // pred_fallthru
          _
        %p343 = pneg %p41
        %p344 = pneg %p38
        %p345 = pneg %p62
        %p346 = pneg %p59
        %s347 = sand.u32 %s75, 1
        %s348 = scalar_lea.sflag [#allocation5], %s347
        %s349 = sand.u32 %s75, 1
        %s350 = smul.addr %s349, 512
        %s351 = scalar_lea.vmem [#allocation4], %s350
        %p352 = pneg %p88
        %p353 = pneg %p85
        %p354 = scmp.lt.s32.totalorder %s25, 1
        %s355 = scalar_select %p354, %s25, 1
        %s356 = smul.addr %s355, 4
        %s357 = smul.addr %s356, 8
        %s358 = scalar_lea.vmem %s3, %s357
        %p359 = pneg %p114
        %p360 = pneg %p111
        %p361 = scmp.lt.s32.totalorder %s25, 1
        %s362 = scalar_select %p361, %s25, 1
        %s363 = smul.addr %s362, 2
        %s364 = smul.addr %s363, 8
        %s365 = scalar_lea.vmem %s4, %s364
        %p366 = pneg %p140
        %p367 = pneg %p137
        %s368 = sand.u32 %s153, 1
        %s369 = scalar_lea.sflag [#allocation7], %s368
        %s370 = sand.u32 %s153, 1
        %s371 = smul.addr %s370, 512
        %s372 = scalar_lea.vmem [#allocation6], %s371
        %p373 = pneg %p166
        %p374 = pneg %p163
        %p375 = pneg %p187
        %p376 = pneg %p184
        %p377 = pneg %p208
        %p378 = pneg %p205
        %p379 = pneg %p229
        %p380 = pneg %p226
        %p381 = scmp.lt.s32.totalorder %s25, 1
        %s382 = scalar_select %p381, %s25, 1
        %s383 = smul.addr %s382, 4
        %s384 = smul.addr %s383, 8
        %s385 = scalar_lea.vmem %s3, %s384
        %p386 = scmp.lt.s32.totalorder %s25, 1
        %s387 = scalar_select %p386, %s25, 1
        %s388 = smul.addr %s387, 2
        %s389 = smul.addr %s388, 8
        %s390 = scalar_lea.vmem %s4, %s389
        %p392 = scmp.eq.s32.totalorder %s25, 0
        // Predicated region
        $region61: #{ffo_forward.1} parent=51 // pred_check
          %p393 = pneg %p392
        $region62: #{ffo_forward.1} parent=51 // pred_check_branch
          %395 = sbr.rel (%p393) target = $region64
        $region63: #{ffo_forward.1} parent=51 // pred_region
          %v396 = vld [vmem:[%s0] sm:$0xff]
          %v397 = vld [vmem:[%s0 + $0x8] sm:$0xff]
          %v398 = vld [vmem:[%s0 + $0x10] sm:$0xff]
          %v399 = vld [vmem:[%s0 + $0x18] sm:$0xff]
          %v400 = vld [vmem:[%s0 + $0x20] sm:$0xff]
          %v401 = vld [vmem:[%s0 + $0x28] sm:$0xff]
          %v402 = vld [vmem:[%s0 + $0x30] sm:$0xff]
          %v403 = vld [vmem:[%s0 + $0x38] sm:$0xff]
          %v404 = vadd.f32 %v396, %v397
          %v405 = vadd.f32 %v404, %v398
          %v406 = vadd.f32 %v405, %v399
          %v407 = vadd.f32 %v406, %v400
          %v408 = vadd.f32 %v407, %v401
          %v409 = vadd.f32 %v408, %v402
          %v410 = vadd.f32 %v409, %v403
          %411 = vadd.xlane.f32.xlu0 %v410
          %v412 = vpop.xlane.xlu0 %411
          %v413 = vrcp.pop 1024.0
          %v414 = vmul.f32 %v412, %v413
          %v415 = vld [vmem:[%s1] sm:$0xff]
          %v416 = vmul.f32 %v415, %v414
          %418 = vrot.lane.b32.xlu0 %v415, 127
          %v419 = vpop.permute.xlu0 %418
          %v421 = vadd.f32 %v416, %v419
          %v422 = vxor.u32 %v421, 2147483648
          %v423 = vmul.f32 %v422, 1.442695
          %v424 = vpow.pop %v423
          %v425 = vadd.f32 %v424, 1.0
          %v426 = vrcp.pop %v425
          %v427 = vmul.f32 1.0, %v426
          %429 = vset.pattern.permute.xlu0 0
          %430 = vperm.xlu0 %429, %v427
          %v431 = vpop.permute.xlu0 %430
          %vm433 = vcmp.gt.f32.partialorder %v396, %v431
          %vm434 = vcmp.gt.f32.partialorder %v397, %v431
          %vm435 = vcmp.gt.f32.partialorder %v398, %v431
          %vm436 = vcmp.gt.f32.partialorder %v399, %v431
          %vm437 = vcmp.gt.f32.partialorder %v400, %v431
          %vm438 = vcmp.gt.f32.partialorder %v401, %v431
          %vm439 = vcmp.gt.f32.partialorder %v402, %v431
          %vm440 = vcmp.gt.f32.partialorder %v403, %v431
          %v441 = vsel %vm433, 0.0, %v396
          %v442 = vsel %vm434, 0.0, %v397
          %v443 = vsel %vm435, 0.0, %v398
          %v444 = vsel %vm436, 0.0, %v399
          %v445 = vsel %vm437, 0.0, %v400
          %v446 = vsel %vm438, 0.0, %v401
          %v447 = vsel %vm439, 0.0, %v402
          %v448 = vsel %vm440, 0.0, %v403
          %v449 = vpack.c.bf16 %v441, %v441
          %v450 = vpack.c.bf16 %v442, %v442
          %v451 = vpack.c.bf16 %v443, %v443
          %v452 = vpack.c.bf16 %v444, %v444
          %v453 = vpack.c.bf16 %v445, %v445
          %v454 = vpack.c.bf16 %v446, %v446
          %v455 = vpack.c.bf16 %v447, %v447
          %v456 = vpack.c.bf16 %v448, %v448
          %v465 = vunpack.c.l.b16 %v449
          %v466 = vunpack.c.l.b16 %v450
          %v467 = vunpack.c.l.b16 %v451
          %v468 = vunpack.c.l.b16 %v452
          %v469 = vunpack.c.l.b16 %v453
          %v470 = vunpack.c.l.b16 %v454
          %v471 = vunpack.c.l.b16 %v455
          %v472 = vunpack.c.l.b16 %v456
          %v473 = vpack.c.b16 %v466, %v465
          %v474 = vpack.c.b16 %v468, %v467
          %v475 = vpack.c.b16 %v470, %v469
          %v476 = vpack.c.b16 %v472, %v471
          %481 = vst [vmem:[#allocation2] sm:$0xff] %v473
          %482 = vst [vmem:[#allocation2 + $0x8] sm:$0xff] %v474
          %483 = vst [vmem:[#allocation2 + $0x10] sm:$0xff] %v475
          %484 = vst [vmem:[#allocation2 + $0x18] sm:$0xff] %v476
          %485 = vst [vmem:[#allocation3] sm:$0xff] 0.0
          %486 = vst [vmem:[#allocation3 + $0x8] sm:$0xff] 0.0
          %487 = vst [vmem:[#allocation3 + $0x10] sm:$0xff] 0.0
          %488 = vst [vmem:[#allocation3 + $0x18] sm:$0xff] 0.0
          %489 = vst [vmem:[#allocation3 + $0x20] sm:$0xff] 0.0
          %490 = vst [vmem:[#allocation3 + $0x28] sm:$0xff] 0.0
          %491 = vst [vmem:[#allocation3 + $0x30] sm:$0xff] 0.0
          %492 = vst [vmem:[#allocation3 + $0x38] sm:$0xff] 0.0
        $region64: #{ffo_forward.1} parent=51 // pred_fallthru
          _
        %v493 = vld [vmem:[#allocation2] sm:$0xff]
        %v494 = vld [vmem:[#allocation2 + $0x8] sm:$0xff]
        %v495 = vld [vmem:[#allocation2 + $0x10] sm:$0xff]
        %v496 = vld [vmem:[#allocation2 + $0x18] sm:$0xff]
        %v497 = vld [vmem:[%s329] sm:$0xf]
        %v498 = vld [vmem:[%s329 + $0x4] sm:$0xf]
        %v499 = vld [vmem:[%s329 + $0x8] sm:$0xf]
        %v500 = vld [vmem:[%s329 + $0xc] sm:$0xf]
        %v501 = vld [vmem:[%s329 + $0x10] sm:$0xf]
        %v502 = vld [vmem:[%s329 + $0x14] sm:$0xf]
        %v503 = vld [vmem:[%s329 + $0x18] sm:$0xf]
        %v504 = vld [vmem:[%s329 + $0x1c] sm:$0xf]
        %v505 = vld [vmem:[%s329 + $0x20] sm:$0xf]
        %v506 = vld [vmem:[%s329 + $0x24] sm:$0xf]
        %v507 = vld [vmem:[%s329 + $0x28] sm:$0xf]
        %v508 = vld [vmem:[%s329 + $0x2c] sm:$0xf]
        %v509 = vld [vmem:[%s329 + $0x30] sm:$0xf]
        %v510 = vld [vmem:[%s329 + $0x34] sm:$0xf]
        %v511 = vld [vmem:[%s329 + $0x38] sm:$0xf]
        %v512 = vld [vmem:[%s329 + $0x3c] sm:$0xf]
        %v513 = vld [vmem:[%s329 + $0x40] sm:$0xf]
        %v514 = vld [vmem:[%s329 + $0x44] sm:$0xf]
        %v515 = vld [vmem:[%s329 + $0x48] sm:$0xf]
        %v516 = vld [vmem:[%s329 + $0x4c] sm:$0xf]
        %v517 = vld [vmem:[%s329 + $0x50] sm:$0xf]
        %v518 = vld [vmem:[%s329 + $0x54] sm:$0xf]
        %v519 = vld [vmem:[%s329 + $0x58] sm:$0xf]
        %v520 = vld [vmem:[%s329 + $0x5c] sm:$0xf]
        %v521 = vld [vmem:[%s329 + $0x60] sm:$0xf]
        %v522 = vld [vmem:[%s329 + $0x64] sm:$0xf]
        %v523 = vld [vmem:[%s329 + $0x68] sm:$0xf]
        %v524 = vld [vmem:[%s329 + $0x6c] sm:$0xf]
        %v525 = vld [vmem:[%s329 + $0x70] sm:$0xf]
        %v526 = vld [vmem:[%s329 + $0x74] sm:$0xf]
        %v527 = vld [vmem:[%s329 + $0x78] sm:$0xf]
        %v528 = vld [vmem:[%s329 + $0x7c] sm:$0xf]
        %v529 = vld [vmem:[%s329 + $0x80] sm:$0xf]
        %v530 = vld [vmem:[%s329 + $0x84] sm:$0xf]
        %v531 = vld [vmem:[%s329 + $0x88] sm:$0xf]
        %v532 = vld [vmem:[%s329 + $0x8c] sm:$0xf]
        %v533 = vld [vmem:[%s329 + $0x90] sm:$0xf]
        %v534 = vld [vmem:[%s329 + $0x94] sm:$0xf]
        %v535 = vld [vmem:[%s329 + $0x98] sm:$0xf]
        %v536 = vld [vmem:[%s329 + $0x9c] sm:$0xf]
        %v537 = vld [vmem:[%s329 + $0xa0] sm:$0xf]
        %v538 = vld [vmem:[%s329 + $0xa4] sm:$0xf]
        %v539 = vld [vmem:[%s329 + $0xa8] sm:$0xf]
        %v540 = vld [vmem:[%s329 + $0xac] sm:$0xf]
        %v541 = vld [vmem:[%s329 + $0xb0] sm:$0xf]
        %v542 = vld [vmem:[%s329 + $0xb4] sm:$0xf]
        %v543 = vld [vmem:[%s329 + $0xb8] sm:$0xf]
        %v544 = vld [vmem:[%s329 + $0xbc] sm:$0xf]
        %v545 = vld [vmem:[%s329 + $0xc0] sm:$0xf]
        %v546 = vld [vmem:[%s329 + $0xc4] sm:$0xf]
        %v547 = vld [vmem:[%s329 + $0xc8] sm:$0xf]
        %v548 = vld [vmem:[%s329 + $0xcc] sm:$0xf]
        %v549 = vld [vmem:[%s329 + $0xd0] sm:$0xf]
        %v550 = vld [vmem:[%s329 + $0xd4] sm:$0xf]
        %v551 = vld [vmem:[%s329 + $0xd8] sm:$0xf]
        %v552 = vld [vmem:[%s329 + $0xdc] sm:$0xf]
        %v553 = vld [vmem:[%s329 + $0xe0] sm:$0xf]
        %v554 = vld [vmem:[%s329 + $0xe4] sm:$0xf]
        %v555 = vld [vmem:[%s329 + $0xe8] sm:$0xf]
        %v556 = vld [vmem:[%s329 + $0xec] sm:$0xf]
        %v557 = vld [vmem:[%s329 + $0xf0] sm:$0xf]
        %v558 = vld [vmem:[%s329 + $0xf4] sm:$0xf]
        %v559 = vld [vmem:[%s329 + $0xf8] sm:$0xf]
        %v560 = vld [vmem:[%s329 + $0xfc] sm:$0xf]
        %v561 = vld [vmem:[%s329 + $0x100] sm:$0xf]
        %v562 = vld [vmem:[%s329 + $0x104] sm:$0xf]
        %v563 = vld [vmem:[%s329 + $0x108] sm:$0xf]
        %v564 = vld [vmem:[%s329 + $0x10c] sm:$0xf]
        %v565 = vld [vmem:[%s329 + $0x110] sm:$0xf]
        %v566 = vld [vmem:[%s329 + $0x114] sm:$0xf]
        %v567 = vld [vmem:[%s329 + $0x118] sm:$0xf]
        %v568 = vld [vmem:[%s329 + $0x11c] sm:$0xf]
        %v569 = vld [vmem:[%s329 + $0x120] sm:$0xf]
        %v570 = vld [vmem:[%s329 + $0x124] sm:$0xf]
        %v571 = vld [vmem:[%s329 + $0x128] sm:$0xf]
        %v572 = vld [vmem:[%s329 + $0x12c] sm:$0xf]
        %v573 = vld [vmem:[%s329 + $0x130] sm:$0xf]
        %v574 = vld [vmem:[%s329 + $0x134] sm:$0xf]
        %v575 = vld [vmem:[%s329 + $0x138] sm:$0xf]
        %v576 = vld [vmem:[%s329 + $0x13c] sm:$0xf]
        %v577 = vld [vmem:[%s329 + $0x140] sm:$0xf]
        %v578 = vld [vmem:[%s329 + $0x144] sm:$0xf]
        %v579 = vld [vmem:[%s329 + $0x148] sm:$0xf]
        %v580 = vld [vmem:[%s329 + $0x14c] sm:$0xf]
        %v581 = vld [vmem:[%s329 + $0x150] sm:$0xf]
        %v582 = vld [vmem:[%s329 + $0x154] sm:$0xf]
        %v583 = vld [vmem:[%s329 + $0x158] sm:$0xf]
        %v584 = vld [vmem:[%s329 + $0x15c] sm:$0xf]
        %v585 = vld [vmem:[%s329 + $0x160] sm:$0xf]
        %v586 = vld [vmem:[%s329 + $0x164] sm:$0xf]
        %v587 = vld [vmem:[%s329 + $0x168] sm:$0xf]
        %v588 = vld [vmem:[%s329 + $0x16c] sm:$0xf]
        %v589 = vld [vmem:[%s329 + $0x170] sm:$0xf]
        %v590 = vld [vmem:[%s329 + $0x174] sm:$0xf]
        %v591 = vld [vmem:[%s329 + $0x178] sm:$0xf]
        %v592 = vld [vmem:[%s329 + $0x17c] sm:$0xf]
        %v593 = vld [vmem:[%s329 + $0x180] sm:$0xf]
        %v594 = vld [vmem:[%s329 + $0x184] sm:$0xf]
        %v595 = vld [vmem:[%s329 + $0x188] sm:$0xf]
        %v596 = vld [vmem:[%s329 + $0x18c] sm:$0xf]
        %v597 = vld [vmem:[%s329 + $0x190] sm:$0xf]
        %v598 = vld [vmem:[%s329 + $0x194] sm:$0xf]
        %v599 = vld [vmem:[%s329 + $0x198] sm:$0xf]
        %v600 = vld [vmem:[%s329 + $0x19c] sm:$0xf]
        %v601 = vld [vmem:[%s329 + $0x1a0] sm:$0xf]
        %v602 = vld [vmem:[%s329 + $0x1a4] sm:$0xf]
        %v603 = vld [vmem:[%s329 + $0x1a8] sm:$0xf]
        %v604 = vld [vmem:[%s329 + $0x1ac] sm:$0xf]
        %v605 = vld [vmem:[%s329 + $0x1b0] sm:$0xf]
        %v606 = vld [vmem:[%s329 + $0x1b4] sm:$0xf]
        %v607 = vld [vmem:[%s329 + $0x1b8] sm:$0xf]
        %v608 = vld [vmem:[%s329 + $0x1bc] sm:$0xf]
        %v609 = vld [vmem:[%s329 + $0x1c0] sm:$0xf]
        %v610 = vld [vmem:[%s329 + $0x1c4] sm:$0xf]
        %v611 = vld [vmem:[%s329 + $0x1c8] sm:$0xf]
        %v612 = vld [vmem:[%s329 + $0x1cc] sm:$0xf]
        %v613 = vld [vmem:[%s329 + $0x1d0] sm:$0xf]
        %v614 = vld [vmem:[%s329 + $0x1d4] sm:$0xf]
        %v615 = vld [vmem:[%s329 + $0x1d8] sm:$0xf]
        %v616 = vld [vmem:[%s329 + $0x1dc] sm:$0xf]
        %v617 = vld [vmem:[%s329 + $0x1e0] sm:$0xf]
        %v618 = vld [vmem:[%s329 + $0x1e4] sm:$0xf]
        %v619 = vld [vmem:[%s329 + $0x1e8] sm:$0xf]
        %v620 = vld [vmem:[%s329 + $0x1ec] sm:$0xf]
        %v621 = vld [vmem:[%s329 + $0x1f0] sm:$0xf]
        %v622 = vld [vmem:[%s329 + $0x1f4] sm:$0xf]
        %v623 = vld [vmem:[%s329 + $0x1f8] sm:$0xf]
        %v624 = vld [vmem:[%s329 + $0x1fc] sm:$0xf]
        %v629 = vunpack.c.l.b16 %v493
        %v630 = vunpack.c.h.b16 %v493
        %v631 = vunpack.c.l.b16 %v494
        %v632 = vunpack.c.h.b16 %v494
        %v633 = vunpack.c.l.b16 %v495
        %v634 = vunpack.c.h.b16 %v495
        %v635 = vunpack.c.l.b16 %v496
        %v636 = vunpack.c.h.b16 %v496
        %v637 = vpack.c.b16 %v629, %v629
        %v638 = vpack.c.b16 %v630, %v630
        %v639 = vpack.c.b16 %v631, %v631
        %v640 = vpack.c.b16 %v632, %v632
        %v641 = vpack.c.b16 %v633, %v633
        %v642 = vpack.c.b16 %v634, %v634
        %v643 = vpack.c.b16 %v635, %v635
        %v644 = vpack.c.b16 %v636, %v636
        %v781 = vunpack.c.l.b16 %v497
        %v782 = vunpack.c.l.b16 %v498
        %v783 = vunpack.c.l.b16 %v499
        %v784 = vunpack.c.l.b16 %v500
        %v785 = vunpack.c.l.b16 %v501
        %v786 = vunpack.c.l.b16 %v502
        %v787 = vunpack.c.l.b16 %v503
        %v788 = vunpack.c.l.b16 %v504
        %v789 = vunpack.c.l.b16 %v505
        %v790 = vunpack.c.l.b16 %v506
        %v791 = vunpack.c.l.b16 %v507
        %v792 = vunpack.c.l.b16 %v508
        %v793 = vunpack.c.l.b16 %v509
        %v794 = vunpack.c.l.b16 %v510
        %v795 = vunpack.c.l.b16 %v511
        %v796 = vunpack.c.l.b16 %v512
        %v797 = vunpack.c.l.b16 %v513
        %v798 = vunpack.c.l.b16 %v514
        %v799 = vunpack.c.l.b16 %v515
        %v800 = vunpack.c.l.b16 %v516
        %v801 = vunpack.c.l.b16 %v517
        %v802 = vunpack.c.l.b16 %v518
        %v803 = vunpack.c.l.b16 %v519
        %v804 = vunpack.c.l.b16 %v520
        %v805 = vunpack.c.l.b16 %v521
        %v806 = vunpack.c.l.b16 %v522
        %v807 = vunpack.c.l.b16 %v523
        %v808 = vunpack.c.l.b16 %v524
        %v809 = vunpack.c.l.b16 %v525
        %v810 = vunpack.c.l.b16 %v526
        %v811 = vunpack.c.l.b16 %v527
        %v812 = vunpack.c.l.b16 %v528
        %v813 = vunpack.c.l.b16 %v529
        %v814 = vunpack.c.l.b16 %v530
        %v815 = vunpack.c.l.b16 %v531
        %v816 = vunpack.c.l.b16 %v532
        %v817 = vunpack.c.l.b16 %v533
        %v818 = vunpack.c.l.b16 %v534
        %v819 = vunpack.c.l.b16 %v535
        %v820 = vunpack.c.l.b16 %v536
        %v821 = vunpack.c.l.b16 %v537
        %v822 = vunpack.c.l.b16 %v538
        %v823 = vunpack.c.l.b16 %v539
        %v824 = vunpack.c.l.b16 %v540
        %v825 = vunpack.c.l.b16 %v541
        %v826 = vunpack.c.l.b16 %v542
        %v827 = vunpack.c.l.b16 %v543
        %v828 = vunpack.c.l.b16 %v544
        %v829 = vunpack.c.l.b16 %v545
        %v830 = vunpack.c.l.b16 %v546
        %v831 = vunpack.c.l.b16 %v547
        %v832 = vunpack.c.l.b16 %v548
        %v833 = vunpack.c.l.b16 %v549
        %v834 = vunpack.c.l.b16 %v550
        %v835 = vunpack.c.l.b16 %v551
        %v836 = vunpack.c.l.b16 %v552
        %v837 = vunpack.c.l.b16 %v553
        %v838 = vunpack.c.l.b16 %v554
        %v839 = vunpack.c.l.b16 %v555
        %v840 = vunpack.c.l.b16 %v556
        %v841 = vunpack.c.l.b16 %v557
        %v842 = vunpack.c.l.b16 %v558
        %v843 = vunpack.c.l.b16 %v559
        %v844 = vunpack.c.l.b16 %v560
        %v845 = vunpack.c.l.b16 %v561
        %v846 = vunpack.c.l.b16 %v562
        %v847 = vunpack.c.l.b16 %v563
        %v848 = vunpack.c.l.b16 %v564
        %v849 = vunpack.c.l.b16 %v565
        %v850 = vunpack.c.l.b16 %v566
        %v851 = vunpack.c.l.b16 %v567
        %v852 = vunpack.c.l.b16 %v568
        %v853 = vunpack.c.l.b16 %v569
        %v854 = vunpack.c.l.b16 %v570
        %v855 = vunpack.c.l.b16 %v571
        %v856 = vunpack.c.l.b16 %v572
        %v857 = vunpack.c.l.b16 %v573
        %v858 = vunpack.c.l.b16 %v574
        %v859 = vunpack.c.l.b16 %v575
        %v860 = vunpack.c.l.b16 %v576
        %v861 = vunpack.c.l.b16 %v577
        %v862 = vunpack.c.l.b16 %v578
        %v863 = vunpack.c.l.b16 %v579
        %v864 = vunpack.c.l.b16 %v580
        %v865 = vunpack.c.l.b16 %v581
        %v866 = vunpack.c.l.b16 %v582
        %v867 = vunpack.c.l.b16 %v583
        %v868 = vunpack.c.l.b16 %v584
        %v869 = vunpack.c.l.b16 %v585
        %v870 = vunpack.c.l.b16 %v586
        %v871 = vunpack.c.l.b16 %v587
        %v872 = vunpack.c.l.b16 %v588
        %v873 = vunpack.c.l.b16 %v589
        %v874 = vunpack.c.l.b16 %v590
        %v875 = vunpack.c.l.b16 %v591
        %v876 = vunpack.c.l.b16 %v592
        %v877 = vunpack.c.l.b16 %v593
        %v878 = vunpack.c.l.b16 %v594
        %v879 = vunpack.c.l.b16 %v595
        %v880 = vunpack.c.l.b16 %v596
        %v881 = vunpack.c.l.b16 %v597
        %v882 = vunpack.c.l.b16 %v598
        %v883 = vunpack.c.l.b16 %v599
        %v884 = vunpack.c.l.b16 %v600
        %v885 = vunpack.c.l.b16 %v601
        %v886 = vunpack.c.l.b16 %v602
        %v887 = vunpack.c.l.b16 %v603
        %v888 = vunpack.c.l.b16 %v604
        %v889 = vunpack.c.l.b16 %v605
        %v890 = vunpack.c.l.b16 %v606
        %v891 = vunpack.c.l.b16 %v607
        %v892 = vunpack.c.l.b16 %v608
        %v893 = vunpack.c.l.b16 %v609
        %v894 = vunpack.c.l.b16 %v610
        %v895 = vunpack.c.l.b16 %v611
        %v896 = vunpack.c.l.b16 %v612
        %v897 = vunpack.c.l.b16 %v613
        %v898 = vunpack.c.l.b16 %v614
        %v899 = vunpack.c.l.b16 %v615
        %v900 = vunpack.c.l.b16 %v616
        %v901 = vunpack.c.l.b16 %v617
        %v902 = vunpack.c.l.b16 %v618
        %v903 = vunpack.c.l.b16 %v619
        %v904 = vunpack.c.l.b16 %v620
        %v905 = vunpack.c.l.b16 %v621
        %v906 = vunpack.c.l.b16 %v622
        %v907 = vunpack.c.l.b16 %v623
        %v908 = vunpack.c.l.b16 %v624
        %v909 = vpack.c.b16 %v782, %v781
        %v910 = vpack.c.b16 %v784, %v783
        %v911 = vpack.c.b16 %v786, %v785
        %v912 = vpack.c.b16 %v788, %v787
        %v913 = vpack.c.b16 %v790, %v789
        %v914 = vpack.c.b16 %v792, %v791
        %v915 = vpack.c.b16 %v794, %v793
        %v916 = vpack.c.b16 %v796, %v795
        %v917 = vpack.c.b16 %v798, %v797
        %v918 = vpack.c.b16 %v800, %v799
        %v919 = vpack.c.b16 %v802, %v801
        %v920 = vpack.c.b16 %v804, %v803
        %v921 = vpack.c.b16 %v806, %v805
        %v922 = vpack.c.b16 %v808, %v807
        %v923 = vpack.c.b16 %v810, %v809
        %v924 = vpack.c.b16 %v812, %v811
        %v925 = vpack.c.b16 %v814, %v813
        %v926 = vpack.c.b16 %v816, %v815
        %v927 = vpack.c.b16 %v818, %v817
        %v928 = vpack.c.b16 %v820, %v819
        %v929 = vpack.c.b16 %v822, %v821
        %v930 = vpack.c.b16 %v824, %v823
        %v931 = vpack.c.b16 %v826, %v825
        %v932 = vpack.c.b16 %v828, %v827
        %v933 = vpack.c.b16 %v830, %v829
        %v934 = vpack.c.b16 %v832, %v831
        %v935 = vpack.c.b16 %v834, %v833
        %v936 = vpack.c.b16 %v836, %v835
        %v937 = vpack.c.b16 %v838, %v837
        %v938 = vpack.c.b16 %v840, %v839
        %v939 = vpack.c.b16 %v842, %v841
        %v940 = vpack.c.b16 %v844, %v843
        %v941 = vpack.c.b16 %v846, %v845
        %v942 = vpack.c.b16 %v848, %v847
        %v943 = vpack.c.b16 %v850, %v849
        %v944 = vpack.c.b16 %v852, %v851
        %v945 = vpack.c.b16 %v854, %v853
        %v946 = vpack.c.b16 %v856, %v855
        %v947 = vpack.c.b16 %v858, %v857
        %v948 = vpack.c.b16 %v860, %v859
        %v949 = vpack.c.b16 %v862, %v861
        %v950 = vpack.c.b16 %v864, %v863
        %v951 = vpack.c.b16 %v866, %v865
        %v952 = vpack.c.b16 %v868, %v867
        %v953 = vpack.c.b16 %v870, %v869
        %v954 = vpack.c.b16 %v872, %v871
        %v955 = vpack.c.b16 %v874, %v873
        %v956 = vpack.c.b16 %v876, %v875
        %v957 = vpack.c.b16 %v878, %v877
        %v958 = vpack.c.b16 %v880, %v879
        %v959 = vpack.c.b16 %v882, %v881
        %v960 = vpack.c.b16 %v884, %v883
        %v961 = vpack.c.b16 %v886, %v885
        %v962 = vpack.c.b16 %v888, %v887
        %v963 = vpack.c.b16 %v890, %v889
        %v964 = vpack.c.b16 %v892, %v891
        %v965 = vpack.c.b16 %v894, %v893
        %v966 = vpack.c.b16 %v896, %v895
        %v967 = vpack.c.b16 %v898, %v897
        %v968 = vpack.c.b16 %v900, %v899
        %v969 = vpack.c.b16 %v902, %v901
        %v970 = vpack.c.b16 %v904, %v903
        %v971 = vpack.c.b16 %v906, %v905
        %v972 = vpack.c.b16 %v908, %v907
        %1037 = vmatprep.subr.bf16.mxu0 0
        %1038 = vmatpush1.bf16.msra.mxu0 %v909
        %1039 = vmatprep.subr.bf16.mxu0 0
        %1040 = vmatpush1.bf16.msra.mxu0 %v910
        %1041 = vmatprep.subr.bf16.mxu0 0
        %1042 = vmatpush1.bf16.msra.mxu0 %v911
        %1043 = vmatprep.subr.bf16.mxu0 0
        %1044 = vmatpush1.bf16.msra.mxu0 %v912
        %1045 = vmatprep.subr.bf16.mxu0 0
        %1046 = vmatpush1.bf16.msra.mxu0 %v913
        %1047 = vmatprep.subr.bf16.mxu0 0
        %1048 = vmatpush1.bf16.msra.mxu0 %v914
        %1049 = vmatprep.subr.bf16.mxu0 0
        %1050 = vmatpush1.bf16.msra.mxu0 %v915
        %1051 = vmatprep.subr.bf16.mxu0 0
        %1052 = vmatpush1.bf16.msra.mxu0 %v916
        %1053 = vmatprep.subr.bf16.mxu0 0
        %1054 = vmatpush1.bf16.msra.mxu0 %v917
        %1055 = vmatprep.subr.bf16.mxu0 0
        %1056 = vmatpush1.bf16.msra.mxu0 %v918
        %1057 = vmatprep.subr.bf16.mxu0 0
        %1058 = vmatpush1.bf16.msra.mxu0 %v919
        %1059 = vmatprep.subr.bf16.mxu0 0
        %1060 = vmatpush1.bf16.msra.mxu0 %v920
        %1061 = vmatprep.subr.bf16.mxu0 0
        %1062 = vmatpush1.bf16.msra.mxu0 %v921
        %1063 = vmatprep.subr.bf16.mxu0 0
        %1064 = vmatpush1.bf16.msra.mxu0 %v922
        %1065 = vmatprep.subr.bf16.mxu0 0
        %1066 = vmatpush1.bf16.msra.mxu0 %v923
        %1067 = vmatprep.subr.bf16.mxu0 0
        %1068 = vmatpush1.bf16.msra.mxu0 %v924
        %1069 = vmatprep.mubr.bf16.mxu0 %v638
        %1070 = vmatmul.mubr.bf16.gmra.mrb[0].mxu0 %v637
        %v1071 = vpop.f32.mrb[0].mxu0
        %v1072 = vadd.f32 0.0, %v1071
        %v1073 = vpop.f32.mrb[0].mxu0
        %v1074 = vpop.f32.mrb[0].mxu0
        %v1075 = vpop.f32.mrb[0].mxu0
        %1076 = vdwg.mxu0
        %1077 = vmatprep.subr.bf16.mxu0 0
        %1078 = vmatpush1.bf16.msra.mxu0 %v925
        %1079 = vmatprep.subr.bf16.mxu0 0
        %1080 = vmatpush1.bf16.msra.mxu0 %v926
        %1081 = vmatprep.subr.bf16.mxu0 0
        %1082 = vmatpush1.bf16.msra.mxu0 %v927
        %1083 = vmatprep.subr.bf16.mxu0 0
        %1084 = vmatpush1.bf16.msra.mxu0 %v928
        %1085 = vmatprep.subr.bf16.mxu0 0
        %1086 = vmatpush1.bf16.msra.mxu0 %v929
        %1087 = vmatprep.subr.bf16.mxu0 0
        %1088 = vmatpush1.bf16.msra.mxu0 %v930
        %1089 = vmatprep.subr.bf16.mxu0 0
        %1090 = vmatpush1.bf16.msra.mxu0 %v931
        %1091 = vmatprep.subr.bf16.mxu0 0
        %1092 = vmatpush1.bf16.msra.mxu0 %v932
        %1093 = vmatprep.subr.bf16.mxu0 0
        %1094 = vmatpush1.bf16.msra.mxu0 %v933
        %1095 = vmatprep.subr.bf16.mxu0 0
        %1096 = vmatpush1.bf16.msra.mxu0 %v934
        %1097 = vmatprep.subr.bf16.mxu0 0
        %1098 = vmatpush1.bf16.msra.mxu0 %v935
        %1099 = vmatprep.subr.bf16.mxu0 0
        %1100 = vmatpush1.bf16.msra.mxu0 %v936
        %1101 = vmatprep.subr.bf16.mxu0 0
        %1102 = vmatpush1.bf16.msra.mxu0 %v937
        %1103 = vmatprep.subr.bf16.mxu0 0
        %1104 = vmatpush1.bf16.msra.mxu0 %v938
        %1105 = vmatprep.subr.bf16.mxu0 0
        %1106 = vmatpush1.bf16.msra.mxu0 %v939
        %1107 = vmatprep.subr.bf16.mxu0 0
        %1108 = vmatpush1.bf16.msra.mxu0 %v940
        %1109 = vmatprep.mubr.bf16.mxu0 %v640
        %1110 = vmatmul.mubr.bf16.gmra.mrb[0].mxu0 %v639
        %v1111 = vpop.f32.mrb[0].mxu0
        %v1112 = vadd.f32 %v1072, %v1111
        %v1113 = vpop.f32.mrb[0].mxu0
        %v1114 = vpop.f32.mrb[0].mxu0
        %v1115 = vpop.f32.mrb[0].mxu0
        %1116 = vdwg.mxu0
        %1117 = vmatprep.subr.bf16.mxu0 0
        %1118 = vmatpush1.bf16.msra.mxu0 %v941
        %1119 = vmatprep.subr.bf16.mxu0 0
        %1120 = vmatpush1.bf16.msra.mxu0 %v942
        %1121 = vmatprep.subr.bf16.mxu0 0
        %1122 = vmatpush1.bf16.msra.mxu0 %v943
        %1123 = vmatprep.subr.bf16.mxu0 0
        %1124 = vmatpush1.bf16.msra.mxu0 %v944
        %1125 = vmatprep.subr.bf16.mxu0 0
        %1126 = vmatpush1.bf16.msra.mxu0 %v945
        %1127 = vmatprep.subr.bf16.mxu0 0
        %1128 = vmatpush1.bf16.msra.mxu0 %v946
        %1129 = vmatprep.subr.bf16.mxu0 0
        %1130 = vmatpush1.bf16.msra.mxu0 %v947
        %1131 = vmatprep.subr.bf16.mxu0 0
        %1132 = vmatpush1.bf16.msra.mxu0 %v948
        %1133 = vmatprep.subr.bf16.mxu0 0
        %1134 = vmatpush1.bf16.msra.mxu0 %v949
        %1135 = vmatprep.subr.bf16.mxu0 0
        %1136 = vmatpush1.bf16.msra.mxu0 %v950
        %1137 = vmatprep.subr.bf16.mxu0 0
        %1138 = vmatpush1.bf16.msra.mxu0 %v951
        %1139 = vmatprep.subr.bf16.mxu0 0
        %1140 = vmatpush1.bf16.msra.mxu0 %v952
        %1141 = vmatprep.subr.bf16.mxu0 0
        %1142 = vmatpush1.bf16.msra.mxu0 %v953
        %1143 = vmatprep.subr.bf16.mxu0 0
        %1144 = vmatpush1.bf16.msra.mxu0 %v954
        %1145 = vmatprep.subr.bf16.mxu0 0
        %1146 = vmatpush1.bf16.msra.mxu0 %v955
        %1147 = vmatprep.subr.bf16.mxu0 0
        %1148 = vmatpush1.bf16.msra.mxu0 %v956
        %1149 = vmatprep.mubr.bf16.mxu0 %v642
        %1150 = vmatmul.mubr.bf16.gmra.mrb[0].mxu0 %v641
        %v1151 = vpop.f32.mrb[0].mxu0
        %v1152 = vadd.f32 %v1112, %v1151
        %v1153 = vpop.f32.mrb[0].mxu0
        %v1154 = vpop.f32.mrb[0].mxu0
        %v1155 = vpop.f32.mrb[0].mxu0
        %1156 = vdwg.mxu0
        %1157 = vmatprep.subr.bf16.mxu0 0
        %1158 = vmatpush1.bf16.msra.mxu0 %v957
        %1159 = vmatprep.subr.bf16.mxu0 0
        %1160 = vmatpush1.bf16.msra.mxu0 %v958
        %1161 = vmatprep.subr.bf16.mxu0 0
        %1162 = vmatpush1.bf16.msra.mxu0 %v959
        %1163 = vmatprep.subr.bf16.mxu0 0
        %1164 = vmatpush1.bf16.msra.mxu0 %v960
        %1165 = vmatprep.subr.bf16.mxu0 0
        %1166 = vmatpush1.bf16.msra.mxu0 %v961
        %1167 = vmatprep.subr.bf16.mxu0 0
        %1168 = vmatpush1.bf16.msra.mxu0 %v962
        %1169 = vmatprep.subr.bf16.mxu0 0
        %1170 = vmatpush1.bf16.msra.mxu0 %v963
        %1171 = vmatprep.subr.bf16.mxu0 0
        %1172 = vmatpush1.bf16.msra.mxu0 %v964
        %1173 = vmatprep.subr.bf16.mxu0 0
        %1174 = vmatpush1.bf16.msra.mxu0 %v965
        %1175 = vmatprep.subr.bf16.mxu0 0
        %1176 = vmatpush1.bf16.msra.mxu0 %v966
        %1177 = vmatprep.subr.bf16.mxu0 0
        %1178 = vmatpush1.bf16.msra.mxu0 %v967
        %1179 = vmatprep.subr.bf16.mxu0 0
        %1180 = vmatpush1.bf16.msra.mxu0 %v968
        %1181 = vmatprep.subr.bf16.mxu0 0
        %1182 = vmatpush1.bf16.msra.mxu0 %v969
        %1183 = vmatprep.subr.bf16.mxu0 0
        %1184 = vmatpush1.bf16.msra.mxu0 %v970
        %1185 = vmatprep.subr.bf16.mxu0 0
        %1186 = vmatpush1.bf16.msra.mxu0 %v971
        %1187 = vmatprep.subr.bf16.mxu0 0
        %1188 = vmatpush1.bf16.msra.mxu0 %v972
        %1189 = vmatprep.mubr.bf16.mxu0 %v644
        %1190 = vmatmul.mubr.bf16.gmra.mrb[0].mxu0 %v643
        %v1191 = vpop.f32.mrb[0].mxu0
        %v1192 = vadd.f32 %v1152, %v1191
        %v1193 = vpop.f32.mrb[0].mxu0
        %v1194 = vpop.f32.mrb[0].mxu0
        %v1195 = vpop.f32.mrb[0].mxu0
        %1196 = vdwg.mxu0
        %1197 = vrot.lane.b32.xlu0 %v1192, 64
        %v1198 = vpop.permute.xlu0 %1197
        %v1199 = vld [vmem:[%s385] sm:$0xff]
        %v1200 = vld [vmem:[%s385 + $0x8] sm:$0xff]
        %v1201 = vld [vmem:[%s385 + $0x10] sm:$0xff]
        %v1202 = vld [vmem:[%s385 + $0x18] sm:$0xff]
        %v1203 = vmul.f32 %v1192, %v1199
        %v1204 = vmul.f32 %v1198, %v1200
        %v1205 = vadd.f32 %v1203, %v1204
        %v1206 = vmul.f32 %v1198, %v1201
        %v1207 = vmul.f32 %v1192, %v1202
        %v1208 = vadd.f32 %v1206, %v1207
        %v1209 = vld [vmem:[%s390] sm:$0xff]
        %v1210 = vld [vmem:[%s390 + $0x8] sm:$0xff]
        %vm1211 = vcmask 64512
        %v1213 = vsel %vm1211, %v1210, 0
        %1215 = vmatprep.subr.mxu0 0.0
        %1216 = vmatpush1.msra.mxu0 %v1208
        %1217 = vmatprep.subr.mxu0 0.0
        %1218 = vmatpush1.msra.mxu0 0.0
        %1219 = vmatprep.subr.mxu0 0.0
        %1220 = vmatpush1.msra.mxu0 0.0
        %1221 = vmatprep.subr.mxu0 0.0
        %1222 = vmatpush1.msra.mxu0 0.0
        %1223 = vmatprep.subr.mxu0 0.0
        %1224 = vmatpush1.msra.mxu0 0.0
        %1225 = vmatprep.subr.mxu0 0.0
        %1226 = vmatpush1.msra.mxu0 0.0
        %1227 = vmatprep.subr.mxu0 0.0
        %1228 = vmatpush1.msra.mxu0 0.0
        %1229 = vmatprep.subr.mxu0 0.0
        %1230 = vmatpush1.msra.mxu0 0.0
        %1231 = vmatprep.subr.mxu0 0.0
        %1232 = vmatpush1.msra.mxu0 0.0
        %1233 = vmatprep.subr.mxu0 0.0
        %1234 = vmatpush1.msra.mxu0 0.0
        %1235 = vmatprep.subr.mxu0 0.0
        %1236 = vmatpush1.msra.mxu0 0.0
        %1237 = vmatprep.subr.mxu0 0.0
        %1238 = vmatpush1.msra.mxu0 0.0
        %1239 = vmatprep.subr.mxu0 0.0
        %1240 = vmatpush1.msra.mxu0 0.0
        %1241 = vmatprep.subr.mxu0 0.0
        %1242 = vmatpush1.msra.mxu0 0.0
        %1243 = vmatprep.subr.mxu0 0.0
        %1244 = vmatpush1.msra.mxu0 0.0
        %1245 = vmatprep.subr.mxu0 0.0
        %1246 = vmatpush1.msra.mxu0 0.0
        %1247 = vmatprep.subr.mxu0 0.0
        %1248 = vmatpush1.msra.mxu0 0.0
        %1249 = vmatprep.subr.mxu0 0.0
        %1250 = vmatpush1.msra.mxu0 0.0
        %1251 = vmatprep.subr.mxu0 0.0
        %1252 = vmatpush1.msra.mxu0 0.0
        %1253 = vmatprep.subr.mxu0 0.0
        %1254 = vmatpush1.msra.mxu0 0.0
        %1255 = vmatprep.subr.mxu0 0.0
        %1256 = vmatpush1.msra.mxu0 0.0
        %1257 = vmatprep.subr.mxu0 0.0
        %1258 = vmatpush1.msra.mxu0 0.0
        %1259 = vmatprep.subr.mxu0 0.0
        %1260 = vmatpush1.msra.mxu0 0.0
        %1261 = vmatprep.subr.mxu0 0.0
        %1262 = vmatpush1.msra.mxu0 0.0
        %1263 = vmatprep.subr.mxu0 0.0
        %1264 = vmatpush1.msra.mxu0 0.0
        %1265 = vmatprep.subr.mxu0 0.0
        %1266 = vmatpush1.msra.mxu0 0.0
        %1267 = vmatprep.subr.mxu0 0.0
        %1268 = vmatpush1.msra.mxu0 0.0
        %1269 = vmatprep.subr.mxu0 0.0
        %1270 = vmatpush1.msra.mxu0 0.0
        %1271 = vmatprep.subr.mxu0 0.0
        %1272 = vmatpush1.msra.mxu0 0.0
        %1273 = vmatprep.subr.mxu0 0.0
        %1274 = vmatpush1.msra.mxu0 0.0
        %1275 = vmatprep.subr.mxu0 0.0
        %1276 = vmatpush1.msra.mxu0 0.0
        %1277 = vmatprep.subr.mxu0 0.0
        %1278 = vmatpush1.msra.mxu0 0.0
        %1279 = vmatprep.mubr.f32.mxu0 0.0
        %1280 = vmatmul.mubr.f32.gmra.mrb[0].mxu0 %v1213
        %v1281 = vpop.f32.mrb[0].mxu0
        %v1282 = vadd.f32 0.0, %v1281
        %v1283 = vpop.f32.mrb[0].mxu0
        %1284 = vdwg.mxu0
        %v1286 = vsel %vm1211, %v1209, 0
        %1288 = vmatprep.subr.mxu0 0.0
        %1289 = vmatpush1.msra.mxu0 %v1205
        %1290 = vmatprep.subr.mxu0 0.0
        %1291 = vmatpush1.msra.mxu0 0.0
        %1292 = vmatprep.subr.mxu0 0.0
        %1293 = vmatpush1.msra.mxu0 0.0
        %1294 = vmatprep.subr.mxu0 0.0
        %1295 = vmatpush1.msra.mxu0 0.0
        %1296 = vmatprep.subr.mxu0 0.0
        %1297 = vmatpush1.msra.mxu0 0.0
        %1298 = vmatprep.subr.mxu0 0.0
        %1299 = vmatpush1.msra.mxu0 0.0
        %1300 = vmatprep.subr.mxu0 0.0
        %1301 = vmatpush1.msra.mxu0 0.0
        %1302 = vmatprep.subr.mxu0 0.0
        %1303 = vmatpush1.msra.mxu0 0.0
        %1304 = vmatprep.subr.mxu0 0.0
        %1305 = vmatpush1.msra.mxu0 0.0
        %1306 = vmatprep.subr.mxu0 0.0
        %1307 = vmatpush1.msra.mxu0 0.0
        %1308 = vmatprep.subr.mxu0 0.0
        %1309 = vmatpush1.msra.mxu0 0.0
        %1310 = vmatprep.subr.mxu0 0.0
        %1311 = vmatpush1.msra.mxu0 0.0
        %1312 = vmatprep.subr.mxu0 0.0
        %1313 = vmatpush1.msra.mxu0 0.0
        %1314 = vmatprep.subr.mxu0 0.0
        %1315 = vmatpush1.msra.mxu0 0.0
        %1316 = vmatprep.subr.mxu0 0.0
        %1317 = vmatpush1.msra.mxu0 0.0
        %1318 = vmatprep.subr.mxu0 0.0
        %1319 = vmatpush1.msra.mxu0 0.0
        %1320 = vmatprep.subr.mxu0 0.0
        %1321 = vmatpush1.msra.mxu0 0.0
        %1322 = vmatprep.subr.mxu0 0.0
        %1323 = vmatpush1.msra.mxu0 0.0
        %1324 = vmatprep.subr.mxu0 0.0
        %1325 = vmatpush1.msra.mxu0 0.0
        %1326 = vmatprep.subr.mxu0 0.0
        %1327 = vmatpush1.msra.mxu0 0.0
        %1328 = vmatprep.subr.mxu0 0.0
        %1329 = vmatpush1.msra.mxu0 0.0
        %1330 = vmatprep.subr.mxu0 0.0
        %1331 = vmatpush1.msra.mxu0 0.0
        %1332 = vmatprep.subr.mxu0 0.0
        %1333 = vmatpush1.msra.mxu0 0.0
        %1334 = vmatprep.subr.mxu0 0.0
        %1335 = vmatpush1.msra.mxu0 0.0
        %1336 = vmatprep.subr.mxu0 0.0
        %1337 = vmatpush1.msra.mxu0 0.0
        %1338 = vmatprep.subr.mxu0 0.0
        %1339 = vmatpush1.msra.mxu0 0.0
        %1340 = vmatprep.subr.mxu0 0.0
        %1341 = vmatpush1.msra.mxu0 0.0
        %1342 = vmatprep.subr.mxu0 0.0
        %1343 = vmatpush1.msra.mxu0 0.0
        %1344 = vmatprep.subr.mxu0 0.0
        %1345 = vmatpush1.msra.mxu0 0.0
        %1346 = vmatprep.subr.mxu0 0.0
        %1347 = vmatpush1.msra.mxu0 0.0
        %1348 = vmatprep.subr.mxu0 0.0
        %1349 = vmatpush1.msra.mxu0 0.0
        %1350 = vmatprep.subr.mxu0 0.0
        %1351 = vmatpush1.msra.mxu0 0.0
        %1352 = vmatprep.mubr.f32.mxu0 0.0
        %1353 = vmatmul.mubr.f32.gmra.mrb[0].mxu0 %v1286
        %v1354 = vpop.f32.mrb[0].mxu0
        %v1355 = vadd.f32 %v1282, %v1354
        %v1356 = vpop.f32.mrb[0].mxu0
        %1357 = vdwg.mxu0
        %v1358 = vld [vmem:[#allocation3] sm:$0xff]
        %v1359 = vld [vmem:[#allocation3 + $0x8] sm:$0xff]
        %v1360 = vld [vmem:[#allocation3 + $0x10] sm:$0xff]
        %v1361 = vld [vmem:[#allocation3 + $0x18] sm:$0xff]
        %v1362 = vld [vmem:[#allocation3 + $0x20] sm:$0xff]
        %v1363 = vld [vmem:[#allocation3 + $0x28] sm:$0xff]
        %v1364 = vld [vmem:[#allocation3 + $0x30] sm:$0xff]
        %v1365 = vld [vmem:[#allocation3 + $0x38] sm:$0xff]
        %v1366 = vpack.c.bf16 %v1355, %v1355
        %v1367 = vld [vmem:[%s338] sm:$0xff]
        %v1368 = vld [vmem:[%s338 + $0x8] sm:$0xff]
        %v1369 = vld [vmem:[%s338 + $0x10] sm:$0xff]
        %v1370 = vld [vmem:[%s338 + $0x18] sm:$0xff]
        %v1371 = vld [vmem:[%s338 + $0x20] sm:$0xff]
        %v1372 = vld [vmem:[%s338 + $0x28] sm:$0xff]
        %v1373 = vld [vmem:[%s338 + $0x30] sm:$0xff]
        %v1374 = vld [vmem:[%s338 + $0x38] sm:$0xff]
        %v1375 = vld [vmem:[%s338 + $0x40] sm:$0xff]
        %v1376 = vld [vmem:[%s338 + $0x48] sm:$0xff]
        %v1377 = vld [vmem:[%s338 + $0x50] sm:$0xff]
        %v1378 = vld [vmem:[%s338 + $0x58] sm:$0xff]
        %v1379 = vld [vmem:[%s338 + $0x60] sm:$0xff]
        %v1380 = vld [vmem:[%s338 + $0x68] sm:$0xff]
        %v1381 = vld [vmem:[%s338 + $0x70] sm:$0xff]
        %v1382 = vld [vmem:[%s338 + $0x78] sm:$0xff]
        %v1383 = vld [vmem:[%s338 + $0x80] sm:$0xff]
        %v1384 = vld [vmem:[%s338 + $0x88] sm:$0xff]
        %v1385 = vld [vmem:[%s338 + $0x90] sm:$0xff]
        %v1386 = vld [vmem:[%s338 + $0x98] sm:$0xff]
        %v1387 = vld [vmem:[%s338 + $0xa0] sm:$0xff]
        %v1388 = vld [vmem:[%s338 + $0xa8] sm:$0xff]
        %v1389 = vld [vmem:[%s338 + $0xb0] sm:$0xff]
        %v1390 = vld [vmem:[%s338 + $0xb8] sm:$0xff]
        %v1391 = vld [vmem:[%s338 + $0xc0] sm:$0xff]
        %v1392 = vld [vmem:[%s338 + $0xc8] sm:$0xff]
        %v1393 = vld [vmem:[%s338 + $0xd0] sm:$0xff]
        %v1394 = vld [vmem:[%s338 + $0xd8] sm:$0xff]
        %v1395 = vld [vmem:[%s338 + $0xe0] sm:$0xff]
        %v1396 = vld [vmem:[%s338 + $0xe8] sm:$0xff]
        %v1397 = vld [vmem:[%s338 + $0xf0] sm:$0xff]
        %v1398 = vld [vmem:[%s338 + $0xf8] sm:$0xff]
        %v1399 = vld [vmem:[%s338 + $0x100] sm:$0xff]
        %v1400 = vld [vmem:[%s338 + $0x108] sm:$0xff]
        %v1401 = vld [vmem:[%s338 + $0x110] sm:$0xff]
        %v1402 = vld [vmem:[%s338 + $0x118] sm:$0xff]
        %v1403 = vld [vmem:[%s338 + $0x120] sm:$0xff]
        %v1404 = vld [vmem:[%s338 + $0x128] sm:$0xff]
        %v1405 = vld [vmem:[%s338 + $0x130] sm:$0xff]
        %v1406 = vld [vmem:[%s338 + $0x138] sm:$0xff]
        %v1407 = vld [vmem:[%s338 + $0x140] sm:$0xff]
        %v1408 = vld [vmem:[%s338 + $0x148] sm:$0xff]
        %v1409 = vld [vmem:[%s338 + $0x150] sm:$0xff]
        %v1410 = vld [vmem:[%s338 + $0x158] sm:$0xff]
        %v1411 = vld [vmem:[%s338 + $0x160] sm:$0xff]
        %v1412 = vld [vmem:[%s338 + $0x168] sm:$0xff]
        %v1413 = vld [vmem:[%s338 + $0x170] sm:$0xff]
        %v1414 = vld [vmem:[%s338 + $0x178] sm:$0xff]
        %v1415 = vld [vmem:[%s338 + $0x180] sm:$0xff]
        %v1416 = vld [vmem:[%s338 + $0x188] sm:$0xff]
        %v1417 = vld [vmem:[%s338 + $0x190] sm:$0xff]
        %v1418 = vld [vmem:[%s338 + $0x198] sm:$0xff]
        %v1419 = vld [vmem:[%s338 + $0x1a0] sm:$0xff]
        %v1420 = vld [vmem:[%s338 + $0x1a8] sm:$0xff]
        %v1421 = vld [vmem:[%s338 + $0x1b0] sm:$0xff]
        %v1422 = vld [vmem:[%s338 + $0x1b8] sm:$0xff]
        %v1423 = vld [vmem:[%s338 + $0x1c0] sm:$0xff]
        %v1424 = vld [vmem:[%s338 + $0x1c8] sm:$0xff]
        %v1425 = vld [vmem:[%s338 + $0x1d0] sm:$0xff]
        %v1426 = vld [vmem:[%s338 + $0x1d8] sm:$0xff]
        %v1427 = vld [vmem:[%s338 + $0x1e0] sm:$0xff]
        %v1428 = vld [vmem:[%s338 + $0x1e8] sm:$0xff]
        %v1429 = vld [vmem:[%s338 + $0x1f0] sm:$0xff]
        %v1430 = vld [vmem:[%s338 + $0x1f8] sm:$0xff]
        %v1495 = vunpack.c.l.b16 %v1367
        %v1496 = vunpack.c.h.b16 %v1367
        %v1497 = vunpack.c.l.b16 %v1368
        %v1498 = vunpack.c.h.b16 %v1368
        %v1499 = vunpack.c.l.b16 %v1369
        %v1500 = vunpack.c.h.b16 %v1369
        %v1501 = vunpack.c.l.b16 %v1370
        %v1502 = vunpack.c.h.b16 %v1370
        %v1503 = vunpack.c.l.b16 %v1371
        %v1504 = vunpack.c.h.b16 %v1371
        %v1505 = vunpack.c.l.b16 %v1372
        %v1506 = vunpack.c.h.b16 %v1372
        %v1507 = vunpack.c.l.b16 %v1373
        %v1508 = vunpack.c.h.b16 %v1373
        %v1509 = vunpack.c.l.b16 %v1374
        %v1510 = vunpack.c.h.b16 %v1374
        %v1511 = vunpack.c.l.b16 %v1375
        %v1512 = vunpack.c.h.b16 %v1375
        %v1513 = vunpack.c.l.b16 %v1376
        %v1514 = vunpack.c.h.b16 %v1376
        %v1515 = vunpack.c.l.b16 %v1377
        %v1516 = vunpack.c.h.b16 %v1377
        %v1517 = vunpack.c.l.b16 %v1378
        %v1518 = vunpack.c.h.b16 %v1378
        %v1519 = vunpack.c.l.b16 %v1379
        %v1520 = vunpack.c.h.b16 %v1379
        %v1521 = vunpack.c.l.b16 %v1380
        %v1522 = vunpack.c.h.b16 %v1380
        %v1523 = vunpack.c.l.b16 %v1381
        %v1524 = vunpack.c.h.b16 %v1381
        %v1525 = vunpack.c.l.b16 %v1382
        %v1526 = vunpack.c.h.b16 %v1382
        %v1527 = vunpack.c.l.b16 %v1383
        %v1528 = vunpack.c.h.b16 %v1383
        %v1529 = vunpack.c.l.b16 %v1384
        %v1530 = vunpack.c.h.b16 %v1384
        %v1531 = vunpack.c.l.b16 %v1385
        %v1532 = vunpack.c.h.b16 %v1385
        %v1533 = vunpack.c.l.b16 %v1386
        %v1534 = vunpack.c.h.b16 %v1386
        %v1535 = vunpack.c.l.b16 %v1387
        %v1536 = vunpack.c.h.b16 %v1387
        %v1537 = vunpack.c.l.b16 %v1388
        %v1538 = vunpack.c.h.b16 %v1388
        %v1539 = vunpack.c.l.b16 %v1389
        %v1540 = vunpack.c.h.b16 %v1389
        %v1541 = vunpack.c.l.b16 %v1390
        %v1542 = vunpack.c.h.b16 %v1390
        %v1543 = vunpack.c.l.b16 %v1391
        %v1544 = vunpack.c.h.b16 %v1391
        %v1545 = vunpack.c.l.b16 %v1392
        %v1546 = vunpack.c.h.b16 %v1392
        %v1547 = vunpack.c.l.b16 %v1393
        %v1548 = vunpack.c.h.b16 %v1393
        %v1549 = vunpack.c.l.b16 %v1394
        %v1550 = vunpack.c.h.b16 %v1394
        %v1551 = vunpack.c.l.b16 %v1395
        %v1552 = vunpack.c.h.b16 %v1395
        %v1553 = vunpack.c.l.b16 %v1396
        %v1554 = vunpack.c.h.b16 %v1396
        %v1555 = vunpack.c.l.b16 %v1397
        %v1556 = vunpack.c.h.b16 %v1397
        %v1557 = vunpack.c.l.b16 %v1398
        %v1558 = vunpack.c.h.b16 %v1398
        %v1559 = vunpack.c.l.b16 %v1399
        %v1560 = vunpack.c.h.b16 %v1399
        %v1561 = vunpack.c.l.b16 %v1400
        %v1562 = vunpack.c.h.b16 %v1400
        %v1563 = vunpack.c.l.b16 %v1401
        %v1564 = vunpack.c.h.b16 %v1401
        %v1565 = vunpack.c.l.b16 %v1402
        %v1566 = vunpack.c.h.b16 %v1402
        %v1567 = vunpack.c.l.b16 %v1403
        %v1568 = vunpack.c.h.b16 %v1403
        %v1569 = vunpack.c.l.b16 %v1404
        %v1570 = vunpack.c.h.b16 %v1404
        %v1571 = vunpack.c.l.b16 %v1405
        %v1572 = vunpack.c.h.b16 %v1405
        %v1573 = vunpack.c.l.b16 %v1406
        %v1574 = vunpack.c.h.b16 %v1406
        %v1575 = vunpack.c.l.b16 %v1407
        %v1576 = vunpack.c.h.b16 %v1407
        %v1577 = vunpack.c.l.b16 %v1408
        %v1578 = vunpack.c.h.b16 %v1408
        %v1579 = vunpack.c.l.b16 %v1409
        %v1580 = vunpack.c.h.b16 %v1409
        %v1581 = vunpack.c.l.b16 %v1410
        %v1582 = vunpack.c.h.b16 %v1410
        %v1583 = vunpack.c.l.b16 %v1411
        %v1584 = vunpack.c.h.b16 %v1411
        %v1585 = vunpack.c.l.b16 %v1412
        %v1586 = vunpack.c.h.b16 %v1412
        %v1587 = vunpack.c.l.b16 %v1413
        %v1588 = vunpack.c.h.b16 %v1413
        %v1589 = vunpack.c.l.b16 %v1414
        %v1590 = vunpack.c.h.b16 %v1414
        %v1591 = vunpack.c.l.b16 %v1415
        %v1592 = vunpack.c.h.b16 %v1415
        %v1593 = vunpack.c.l.b16 %v1416
        %v1594 = vunpack.c.h.b16 %v1416
        %v1595 = vunpack.c.l.b16 %v1417
        %v1596 = vunpack.c.h.b16 %v1417
        %v1597 = vunpack.c.l.b16 %v1418
        %v1598 = vunpack.c.h.b16 %v1418
        %v1599 = vunpack.c.l.b16 %v1419
        %v1600 = vunpack.c.h.b16 %v1419
        %v1601 = vunpack.c.l.b16 %v1420
        %v1602 = vunpack.c.h.b16 %v1420
        %v1603 = vunpack.c.l.b16 %v1421
        %v1604 = vunpack.c.h.b16 %v1421
        %v1605 = vunpack.c.l.b16 %v1422
        %v1606 = vunpack.c.h.b16 %v1422
        %v1607 = vunpack.c.l.b16 %v1423
        %v1608 = vunpack.c.h.b16 %v1423
        %v1609 = vunpack.c.l.b16 %v1424
        %v1610 = vunpack.c.h.b16 %v1424
        %v1611 = vunpack.c.l.b16 %v1425
        %v1612 = vunpack.c.h.b16 %v1425
        %v1613 = vunpack.c.l.b16 %v1426
        %v1614 = vunpack.c.h.b16 %v1426
        %v1615 = vunpack.c.l.b16 %v1427
        %v1616 = vunpack.c.h.b16 %v1427
        %v1617 = vunpack.c.l.b16 %v1428
        %v1618 = vunpack.c.h.b16 %v1428
        %v1619 = vunpack.c.l.b16 %v1429
        %v1620 = vunpack.c.h.b16 %v1429
        %v1621 = vunpack.c.l.b16 %v1430
        %v1622 = vunpack.c.h.b16 %v1430
        %v1623 = vpack.c.b16 %v1503, %v1495
        %v1624 = vpack.c.b16 %v1504, %v1496
        %v1625 = vpack.c.b16 %v1505, %v1497
        %v1626 = vpack.c.b16 %v1506, %v1498
        %v1627 = vpack.c.b16 %v1507, %v1499
        %v1628 = vpack.c.b16 %v1508, %v1500
        %v1629 = vpack.c.b16 %v1509, %v1501
        %v1630 = vpack.c.b16 %v1510, %v1502
        %v1631 = vpack.c.b16 %v1519, %v1511
        %v1632 = vpack.c.b16 %v1520, %v1512
        %v1633 = vpack.c.b16 %v1521, %v1513
        %v1634 = vpack.c.b16 %v1522, %v1514
        %v1635 = vpack.c.b16 %v1523, %v1515
        %v1636 = vpack.c.b16 %v1524, %v1516
        %v1637 = vpack.c.b16 %v1525, %v1517
        %v1638 = vpack.c.b16 %v1526, %v1518
        %v1639 = vpack.c.b16 %v1535, %v1527
        %v1640 = vpack.c.b16 %v1536, %v1528
        %v1641 = vpack.c.b16 %v1537, %v1529
        %v1642 = vpack.c.b16 %v1538, %v1530
        %v1643 = vpack.c.b16 %v1539, %v1531
        %v1644 = vpack.c.b16 %v1540, %v1532
        %v1645 = vpack.c.b16 %v1541, %v1533
        %v1646 = vpack.c.b16 %v1542, %v1534
        %v1647 = vpack.c.b16 %v1551, %v1543
        %v1648 = vpack.c.b16 %v1552, %v1544
        %v1649 = vpack.c.b16 %v1553, %v1545
        %v1650 = vpack.c.b16 %v1554, %v1546
        %v1651 = vpack.c.b16 %v1555, %v1547
        %v1652 = vpack.c.b16 %v1556, %v1548
        %v1653 = vpack.c.b16 %v1557, %v1549
        %v1654 = vpack.c.b16 %v1558, %v1550
        %v1655 = vpack.c.b16 %v1567, %v1559
        %v1656 = vpack.c.b16 %v1568, %v1560
        %v1657 = vpack.c.b16 %v1569, %v1561
        %v1658 = vpack.c.b16 %v1570, %v1562
        %v1659 = vpack.c.b16 %v1571, %v1563
        %v1660 = vpack.c.b16 %v1572, %v1564
        %v1661 = vpack.c.b16 %v1573, %v1565
        %v1662 = vpack.c.b16 %v1574, %v1566
        %v1663 = vpack.c.b16 %v1583, %v1575
        %v1664 = vpack.c.b16 %v1584, %v1576
        %v1665 = vpack.c.b16 %v1585, %v1577
        %v1666 = vpack.c.b16 %v1586, %v1578
        %v1667 = vpack.c.b16 %v1587, %v1579
        %v1668 = vpack.c.b16 %v1588, %v1580
        %v1669 = vpack.c.b16 %v1589, %v1581
        %v1670 = vpack.c.b16 %v1590, %v1582
        %v1671 = vpack.c.b16 %v1599, %v1591
        %v1672 = vpack.c.b16 %v1600, %v1592
        %v1673 = vpack.c.b16 %v1601, %v1593
        %v1674 = vpack.c.b16 %v1602, %v1594
        %v1675 = vpack.c.b16 %v1603, %v1595
        %v1676 = vpack.c.b16 %v1604, %v1596
        %v1677 = vpack.c.b16 %v1605, %v1597
        %v1678 = vpack.c.b16 %v1606, %v1598
        %v1679 = vpack.c.b16 %v1615, %v1607
        %v1680 = vpack.c.b16 %v1616, %v1608
        %v1681 = vpack.c.b16 %v1617, %v1609
        %v1682 = vpack.c.b16 %v1618, %v1610
        %v1683 = vpack.c.b16 %v1619, %v1611
        %v1684 = vpack.c.b16 %v1620, %v1612
        %v1685 = vpack.c.b16 %v1621, %v1613
        %v1686 = vpack.c.b16 %v1622, %v1614
        %1751 = vmatprep.subr.bf16.mxu0 %v1624
        %1752 = vmatpush1.bf16.msra.mxu0 %v1623
        %1753 = vmatprep.subr.bf16.mxu0 %v1632
        %1754 = vmatpush1.bf16.msra.mxu0 %v1631
        %1755 = vmatprep.subr.bf16.mxu0 %v1640
        %1756 = vmatpush1.bf16.msra.mxu0 %v1639
        %1757 = vmatprep.subr.bf16.mxu0 %v1648
        %1758 = vmatpush1.bf16.msra.mxu0 %v1647
        %1759 = vmatprep.subr.bf16.mxu0 %v1656
        %1760 = vmatpush1.bf16.msra.mxu0 %v1655
        %1761 = vmatprep.subr.bf16.mxu0 %v1664
        %1762 = vmatpush1.bf16.msra.mxu0 %v1663
        %1763 = vmatprep.subr.bf16.mxu0 %v1672
        %1764 = vmatpush1.bf16.msra.mxu0 %v1671
        %1765 = vmatprep.subr.bf16.mxu0 %v1680
        %1766 = vmatpush1.bf16.msra.mxu0 %v1679
        %1767 = vmatprep.subr.bf16.mxu0 0
        %1768 = vmatpush1.bf16.msra.mxu0 0
        %1769 = vmatprep.subr.bf16.mxu0 0
        %1770 = vmatpush1.bf16.msra.mxu0 0
        %1771 = vmatprep.subr.bf16.mxu0 0
        %1772 = vmatpush1.bf16.msra.mxu0 0
        %1773 = vmatprep.subr.bf16.mxu0 0
        %1774 = vmatpush1.bf16.msra.mxu0 0
        %1775 = vmatprep.subr.bf16.mxu0 0
        %1776 = vmatpush1.bf16.msra.mxu0 0
        %1777 = vmatprep.subr.bf16.mxu0 0
        %1778 = vmatpush1.bf16.msra.mxu0 0
        %1779 = vmatprep.subr.bf16.mxu0 0
        %1780 = vmatpush1.bf16.msra.mxu0 0
        %1781 = vmatprep.subr.bf16.mxu0 0
        %1782 = vmatpush1.bf16.msra.mxu0 0
        %1783 = vmatprep.mubr.bf16.mxu0 0
        %1784 = vmatmul.mubr.bf16.gmra.mrb[0].mxu0 %v1366
        %v1785 = vpop.f32.mrb[0].mxu0
        %v1786 = vadd.f32 0.0, %v1785
        %v1787 = vpop.f32.mrb[0].mxu0
        %v1788 = vadd.f32 0.0, %v1787
        %v1789 = vpop.f32.mrb[0].mxu0
        %v1790 = vpop.f32.mrb[0].mxu0
        %1791 = vdwg.mxu0
        %1792 = vmatprep.subr.bf16.mxu0 %v1626
        %1793 = vmatpush1.bf16.msra.mxu0 %v1625
        %1794 = vmatprep.subr.bf16.mxu0 %v1634
        %1795 = vmatpush1.bf16.msra.mxu0 %v1633
        %1796 = vmatprep.subr.bf16.mxu0 %v1642
        %1797 = vmatpush1.bf16.msra.mxu0 %v1641
        %1798 = vmatprep.subr.bf16.mxu0 %v1650
        %1799 = vmatpush1.bf16.msra.mxu0 %v1649
        %1800 = vmatprep.subr.bf16.mxu0 %v1658
        %1801 = vmatpush1.bf16.msra.mxu0 %v1657
        %1802 = vmatprep.subr.bf16.mxu0 %v1666
        %1803 = vmatpush1.bf16.msra.mxu0 %v1665
        %1804 = vmatprep.subr.bf16.mxu0 %v1674
        %1805 = vmatpush1.bf16.msra.mxu0 %v1673
        %1806 = vmatprep.subr.bf16.mxu0 %v1682
        %1807 = vmatpush1.bf16.msra.mxu0 %v1681
        %1808 = vmatprep.subr.bf16.mxu0 0
        %1809 = vmatpush1.bf16.msra.mxu0 0
        %1810 = vmatprep.subr.bf16.mxu0 0
        %1811 = vmatpush1.bf16.msra.mxu0 0
        %1812 = vmatprep.subr.bf16.mxu0 0
        %1813 = vmatpush1.bf16.msra.mxu0 0
        %1814 = vmatprep.subr.bf16.mxu0 0
        %1815 = vmatpush1.bf16.msra.mxu0 0
        %1816 = vmatprep.subr.bf16.mxu0 0
        %1817 = vmatpush1.bf16.msra.mxu0 0
        %1818 = vmatprep.subr.bf16.mxu0 0
        %1819 = vmatpush1.bf16.msra.mxu0 0
        %1820 = vmatprep.subr.bf16.mxu0 0
        %1821 = vmatpush1.bf16.msra.mxu0 0
        %1822 = vmatprep.subr.bf16.mxu0 0
        %1823 = vmatpush1.bf16.msra.mxu0 0
        %1824 = vmatprep.mubr.bf16.mxu0 0
        %1825 = vmatmul.mubr.bf16.gmra.mrb[0].mxu0 %v1366
        %v1826 = vpop.f32.mrb[0].mxu0
        %v1827 = vadd.f32 0.0, %v1826
        %v1828 = vpop.f32.mrb[0].mxu0
        %v1829 = vadd.f32 0.0, %v1828
        %v1830 = vpop.f32.mrb[0].mxu0
        %v1831 = vpop.f32.mrb[0].mxu0
        %1832 = vdwg.mxu0
        %1833 = vmatprep.subr.bf16.mxu0 %v1628
        %1834 = vmatpush1.bf16.msra.mxu0 %v1627
        %1835 = vmatprep.subr.bf16.mxu0 %v1636
        %1836 = vmatpush1.bf16.msra.mxu0 %v1635
        %1837 = vmatprep.subr.bf16.mxu0 %v1644
        %1838 = vmatpush1.bf16.msra.mxu0 %v1643
        %1839 = vmatprep.subr.bf16.mxu0 %v1652
        %1840 = vmatpush1.bf16.msra.mxu0 %v1651
        %1841 = vmatprep.subr.bf16.mxu0 %v1660
        %1842 = vmatpush1.bf16.msra.mxu0 %v1659
        %1843 = vmatprep.subr.bf16.mxu0 %v1668
        %1844 = vmatpush1.bf16.msra.mxu0 %v1667
        %1845 = vmatprep.subr.bf16.mxu0 %v1676
        %1846 = vmatpush1.bf16.msra.mxu0 %v1675
        %1847 = vmatprep.subr.bf16.mxu0 %v1684
        %1848 = vmatpush1.bf16.msra.mxu0 %v1683
        %1849 = vmatprep.subr.bf16.mxu0 0
        %1850 = vmatpush1.bf16.msra.mxu0 0
        %1851 = vmatprep.subr.bf16.mxu0 0
        %1852 = vmatpush1.bf16.msra.mxu0 0
        %1853 = vmatprep.subr.bf16.mxu0 0
        %1854 = vmatpush1.bf16.msra.mxu0 0
        %1855 = vmatprep.subr.bf16.mxu0 0
        %1856 = vmatpush1.bf16.msra.mxu0 0
        %1857 = vmatprep.subr.bf16.mxu0 0
        %1858 = vmatpush1.bf16.msra.mxu0 0
        %1859 = vmatprep.subr.bf16.mxu0 0
        %1860 = vmatpush1.bf16.msra.mxu0 0
        %1861 = vmatprep.subr.bf16.mxu0 0
        %1862 = vmatpush1.bf16.msra.mxu0 0
        %1863 = vmatprep.subr.bf16.mxu0 0
        %1864 = vmatpush1.bf16.msra.mxu0 0
        %1865 = vmatprep.mubr.bf16.mxu0 0
        %1866 = vmatmul.mubr.bf16.gmra.mrb[0].mxu0 %v1366
        %v1867 = vpop.f32.mrb[0].mxu0
        %v1868 = vadd.f32 0.0, %v1867
        %v1869 = vpop.f32.mrb[0].mxu0
        %v1870 = vadd.f32 0.0, %v1869
        %v1871 = vpop.f32.mrb[0].mxu0
        %v1872 = vpop.f32.mrb[0].mxu0
        %1873 = vdwg.mxu0
        %1874 = vmatprep.subr.bf16.mxu0 %v1630
        %1875 = vmatpush1.bf16.msra.mxu0 %v1629
        %1876 = vmatprep.subr.bf16.mxu0 %v1638
        %1877 = vmatpush1.bf16.msra.mxu0 %v1637
        %1878 = vmatprep.subr.bf16.mxu0 %v1646
        %1879 = vmatpush1.bf16.msra.mxu0 %v1645
        %1880 = vmatprep.subr.bf16.mxu0 %v1654
        %1881 = vmatpush1.bf16.msra.mxu0 %v1653
        %1882 = vmatprep.subr.bf16.mxu0 %v1662
        %1883 = vmatpush1.bf16.msra.mxu0 %v1661
        %1884 = vmatprep.subr.bf16.mxu0 %v1670
        %1885 = vmatpush1.bf16.msra.mxu0 %v1669
        %1886 = vmatprep.subr.bf16.mxu0 %v1678
        %1887 = vmatpush1.bf16.msra.mxu0 %v1677
        %1888 = vmatprep.subr.bf16.mxu0 %v1686
        %1889 = vmatpush1.bf16.msra.mxu0 %v1685
        %1890 = vmatprep.subr.bf16.mxu0 0
        %1891 = vmatpush1.bf16.msra.mxu0 0
        %1892 = vmatprep.subr.bf16.mxu0 0
        %1893 = vmatpush1.bf16.msra.mxu0 0
        %1894 = vmatprep.subr.bf16.mxu0 0
        %1895 = vmatpush1.bf16.msra.mxu0 0
        %1896 = vmatprep.subr.bf16.mxu0 0
        %1897 = vmatpush1.bf16.msra.mxu0 0
        %1898 = vmatprep.subr.bf16.mxu0 0
        %1899 = vmatpush1.bf16.msra.mxu0 0
        %1900 = vmatprep.subr.bf16.mxu0 0
        %1901 = vmatpush1.bf16.msra.mxu0 0
        %1902 = vmatprep.subr.bf16.mxu0 0
        %1903 = vmatpush1.bf16.msra.mxu0 0
        %1904 = vmatprep.subr.bf16.mxu0 0
        %1905 = vmatpush1.bf16.msra.mxu0 0
        %1906 = vmatprep.mubr.bf16.mxu0 0
        %1907 = vmatmul.mubr.bf16.gmra.mrb[0].mxu0 %v1366
        %v1908 = vpop.f32.mrb[0].mxu0
        %v1909 = vadd.f32 0.0, %v1908
        %v1910 = vpop.f32.mrb[0].mxu0
        %v1911 = vadd.f32 0.0, %v1910
        %v1912 = vpop.f32.mrb[0].mxu0
        %v1913 = vpop.f32.mrb[0].mxu0
        %1914 = vdwg.mxu0
        %v1915 = vadd.f32 %v1358, %v1786
        %v1916 = vadd.f32 %v1359, %v1788
        %v1917 = vadd.f32 %v1360, %v1827
        %v1918 = vadd.f32 %v1361, %v1829
        %v1919 = vadd.f32 %v1362, %v1868
        %v1920 = vadd.f32 %v1363, %v1870
        %v1921 = vadd.f32 %v1364, %v1909
        %v1922 = vadd.f32 %v1365, %v1911
        %1923 = vst [vmem:[#allocation3] sm:$0xff] %v1915
        %1924 = vst [vmem:[#allocation3 + $0x8] sm:$0xff] %v1916
        %1925 = vst [vmem:[#allocation3 + $0x10] sm:$0xff] %v1917
        %1926 = vst [vmem:[#allocation3 + $0x18] sm:$0xff] %v1918
        %1927 = vst [vmem:[#allocation3 + $0x20] sm:$0xff] %v1919
        %1928 = vst [vmem:[#allocation3 + $0x28] sm:$0xff] %v1920
        %1929 = vst [vmem:[#allocation3 + $0x30] sm:$0xff] %v1921
        %1930 = vst [vmem:[#allocation3 + $0x38] sm:$0xff] %v1922
        %p1931 = scmp.eq.s32.totalorder %s25, 1
        // Predicated region
        $region65: #{ffo_forward.1} parent=51 // pred_check
          %p1932 = pneg %p1931
        $region66: #{ffo_forward.1} parent=51 // pred_check_branch
          %1934 = sbr.rel (%p1932) target = $region68
        $region67: #{ffo_forward.1} parent=51 // pred_region
          %v1935 = vld [vmem:[%s6] sm:$0xff]
          %v1936 = vld [vmem:[%s0] sm:$0xff]
          %v1937 = vld [vmem:[%s0 + $0x8] sm:$0xff]
          %v1938 = vld [vmem:[%s0 + $0x10] sm:$0xff]
          %v1939 = vld [vmem:[%s0 + $0x18] sm:$0xff]
          %v1940 = vld [vmem:[%s0 + $0x20] sm:$0xff]
          %v1941 = vld [vmem:[%s0 + $0x28] sm:$0xff]
          %v1942 = vld [vmem:[%s0 + $0x30] sm:$0xff]
          %v1943 = vld [vmem:[%s0 + $0x38] sm:$0xff]
          %v1945 = vsel %vm1211, %v1935, 0
          %1947 = vmatprep.subr.mxu0 %v1937
          %1948 = vmatpush1.msra.mxu0 %v1936
          %1949 = vmatprep.subr.mxu0 0.0
          %1950 = vmatpush1.msra.mxu0 0.0
          %1951 = vmatprep.subr.mxu0 0.0
          %1952 = vmatpush1.msra.mxu0 0.0
          %1953 = vmatprep.subr.mxu0 0.0
          %1954 = vmatpush1.msra.mxu0 0.0
          %1955 = vmatprep.subr.mxu0 0.0
          %1956 = vmatpush1.msra.mxu0 0.0
          %1957 = vmatprep.subr.mxu0 0.0
          %1958 = vmatpush1.msra.mxu0 0.0
          %1959 = vmatprep.subr.mxu0 0.0
          %1960 = vmatpush1.msra.mxu0 0.0
          %1961 = vmatprep.subr.mxu0 0.0
          %1962 = vmatpush1.msra.mxu0 0.0
          %1963 = vmatprep.subr.mxu0 0.0
          %1964 = vmatpush1.msra.mxu0 0.0
          %1965 = vmatprep.subr.mxu0 0.0
          %1966 = vmatpush1.msra.mxu0 0.0
          %1967 = vmatprep.subr.mxu0 0.0
          %1968 = vmatpush1.msra.mxu0 0.0
          %1969 = vmatprep.subr.mxu0 0.0
          %1970 = vmatpush1.msra.mxu0 0.0
          %1971 = vmatprep.subr.mxu0 0.0
          %1972 = vmatpush1.msra.mxu0 0.0
          %1973 = vmatprep.subr.mxu0 0.0
          %1974 = vmatpush1.msra.mxu0 0.0
          %1975 = vmatprep.subr.mxu0 0.0
          %1976 = vmatpush1.msra.mxu0 0.0
          %1977 = vmatprep.subr.mxu0 0.0
          %1978 = vmatpush1.msra.mxu0 0.0
          %1979 = vmatprep.subr.mxu0 0.0
          %1980 = vmatpush1.msra.mxu0 0.0
          %1981 = vmatprep.subr.mxu0 0.0
          %1982 = vmatpush1.msra.mxu0 0.0
          %1983 = vmatprep.subr.mxu0 0.0
          %1984 = vmatpush1.msra.mxu0 0.0
          %1985 = vmatprep.subr.mxu0 0.0
          %1986 = vmatpush1.msra.mxu0 0.0
          %1987 = vmatprep.subr.mxu0 0.0
          %1988 = vmatpush1.msra.mxu0 0.0
          %1989 = vmatprep.subr.mxu0 0.0
          %1990 = vmatpush1.msra.mxu0 0.0
          %1991 = vmatprep.subr.mxu0 0.0
          %1992 = vmatpush1.msra.mxu0 0.0
          %1993 = vmatprep.subr.mxu0 0.0
          %1994 = vmatpush1.msra.mxu0 0.0
          %1995 = vmatprep.subr.mxu0 0.0
          %1996 = vmatpush1.msra.mxu0 0.0
          %1997 = vmatprep.subr.mxu0 0.0
          %1998 = vmatpush1.msra.mxu0 0.0
          %1999 = vmatprep.subr.mxu0 0.0
          %2000 = vmatpush1.msra.mxu0 0.0
          %2001 = vmatprep.subr.mxu0 0.0
          %2002 = vmatpush1.msra.mxu0 0.0
          %2003 = vmatprep.subr.mxu0 0.0
          %2004 = vmatpush1.msra.mxu0 0.0
          %2005 = vmatprep.subr.mxu0 0.0
          %2006 = vmatpush1.msra.mxu0 0.0
          %2007 = vmatprep.subr.mxu0 0.0
          %2008 = vmatpush1.msra.mxu0 0.0
          %2009 = vmatprep.subr.mxu0 0.0
          %2010 = vmatpush1.msra.mxu0 0.0
          %2011 = vmatprep.mubr.f32.mxu0 0.0
          %2012 = vmatmul.mubr.f32.gmra.mrb[0].mxu0 %v1945
          %v2013 = vpop.f32.mrb[0].mxu0
          %v2014 = vadd.f32 0.0, %v2013
          %v2015 = vpop.f32.mrb[0].mxu0
          %v2016 = vadd.f32 0.0, %v2015
          %2017 = vdwg.mxu0
          %2018 = vmatprep.subr.mxu0 %v1939
          %2019 = vmatpush1.msra.mxu0 %v1938
          %2020 = vmatprep.subr.mxu0 0.0
          %2021 = vmatpush1.msra.mxu0 0.0
          %2022 = vmatprep.subr.mxu0 0.0
          %2023 = vmatpush1.msra.mxu0 0.0
          %2024 = vmatprep.subr.mxu0 0.0
          %2025 = vmatpush1.msra.mxu0 0.0
          %2026 = vmatprep.subr.mxu0 0.0
          %2027 = vmatpush1.msra.mxu0 0.0
          %2028 = vmatprep.subr.mxu0 0.0
          %2029 = vmatpush1.msra.mxu0 0.0
          %2030 = vmatprep.subr.mxu0 0.0
          %2031 = vmatpush1.msra.mxu0 0.0
          %2032 = vmatprep.subr.mxu0 0.0
          %2033 = vmatpush1.msra.mxu0 0.0
          %2034 = vmatprep.subr.mxu0 0.0
          %2035 = vmatpush1.msra.mxu0 0.0
          %2036 = vmatprep.subr.mxu0 0.0
          %2037 = vmatpush1.msra.mxu0 0.0
          %2038 = vmatprep.subr.mxu0 0.0
          %2039 = vmatpush1.msra.mxu0 0.0
          %2040 = vmatprep.subr.mxu0 0.0
          %2041 = vmatpush1.msra.mxu0 0.0
          %2042 = vmatprep.subr.mxu0 0.0
          %2043 = vmatpush1.msra.mxu0 0.0
          %2044 = vmatprep.subr.mxu0 0.0
          %2045 = vmatpush1.msra.mxu0 0.0
          %2046 = vmatprep.subr.mxu0 0.0
          %2047 = vmatpush1.msra.mxu0 0.0
          %2048 = vmatprep.subr.mxu0 0.0
          %2049 = vmatpush1.msra.mxu0 0.0
          %2050 = vmatprep.subr.mxu0 0.0
          %2051 = vmatpush1.msra.mxu0 0.0
          %2052 = vmatprep.subr.mxu0 0.0
          %2053 = vmatpush1.msra.mxu0 0.0
          %2054 = vmatprep.subr.mxu0 0.0
          %2055 = vmatpush1.msra.mxu0 0.0
          %2056 = vmatprep.subr.mxu0 0.0
          %2057 = vmatpush1.msra.mxu0 0.0
          %2058 = vmatprep.subr.mxu0 0.0
          %2059 = vmatpush1.msra.mxu0 0.0
          %2060 = vmatprep.subr.mxu0 0.0
          %2061 = vmatpush1.msra.mxu0 0.0
          %2062 = vmatprep.subr.mxu0 0.0
          %2063 = vmatpush1.msra.mxu0 0.0
          %2064 = vmatprep.subr.mxu0 0.0
          %2065 = vmatpush1.msra.mxu0 0.0
          %2066 = vmatprep.subr.mxu0 0.0
          %2067 = vmatpush1.msra.mxu0 0.0
          %2068 = vmatprep.subr.mxu0 0.0
          %2069 = vmatpush1.msra.mxu0 0.0
          %2070 = vmatprep.subr.mxu0 0.0
          %2071 = vmatpush1.msra.mxu0 0.0
          %2072 = vmatprep.subr.mxu0 0.0
          %2073 = vmatpush1.msra.mxu0 0.0
          %2074 = vmatprep.subr.mxu0 0.0
          %2075 = vmatpush1.msra.mxu0 0.0
          %2076 = vmatprep.subr.mxu0 0.0
          %2077 = vmatpush1.msra.mxu0 0.0
          %2078 = vmatprep.subr.mxu0 0.0
          %2079 = vmatpush1.msra.mxu0 0.0
          %2080 = vmatprep.subr.mxu0 0.0
          %2081 = vmatpush1.msra.mxu0 0.0
          %2082 = vmatprep.mubr.f32.mxu0 0.0
          %2083 = vmatmul.mubr.f32.gmra.mrb[0].mxu0 %v1945
          %v2084 = vpop.f32.mrb[0].mxu0
          %v2085 = vadd.f32 0.0, %v2084
          %v2086 = vpop.f32.mrb[0].mxu0
          %v2087 = vadd.f32 0.0, %v2086
          %2088 = vdwg.mxu0
          %2089 = vmatprep.subr.mxu0 %v1941
          %2090 = vmatpush1.msra.mxu0 %v1940
          %2091 = vmatprep.subr.mxu0 0.0
          %2092 = vmatpush1.msra.mxu0 0.0
          %2093 = vmatprep.subr.mxu0 0.0
          %2094 = vmatpush1.msra.mxu0 0.0
          %2095 = vmatprep.subr.mxu0 0.0
          %2096 = vmatpush1.msra.mxu0 0.0
          %2097 = vmatprep.subr.mxu0 0.0
          %2098 = vmatpush1.msra.mxu0 0.0
          %2099 = vmatprep.subr.mxu0 0.0
          %2100 = vmatpush1.msra.mxu0 0.0
          %2101 = vmatprep.subr.mxu0 0.0
          %2102 = vmatpush1.msra.mxu0 0.0
          %2103 = vmatprep.subr.mxu0 0.0
          %2104 = vmatpush1.msra.mxu0 0.0
          %2105 = vmatprep.subr.mxu0 0.0
          %2106 = vmatpush1.msra.mxu0 0.0
          %2107 = vmatprep.subr.mxu0 0.0
          %2108 = vmatpush1.msra.mxu0 0.0
          %2109 = vmatprep.subr.mxu0 0.0
          %2110 = vmatpush1.msra.mxu0 0.0
          %2111 = vmatprep.subr.mxu0 0.0
          %2112 = vmatpush1.msra.mxu0 0.0
          %2113 = vmatprep.subr.mxu0 0.0
          %2114 = vmatpush1.msra.mxu0 0.0
          %2115 = vmatprep.subr.mxu0 0.0
          %2116 = vmatpush1.msra.mxu0 0.0
          %2117 = vmatprep.subr.mxu0 0.0
          %2118 = vmatpush1.msra.mxu0 0.0
          %2119 = vmatprep.subr.mxu0 0.0
          %2120 = vmatpush1.msra.mxu0 0.0
          %2121 = vmatprep.subr.mxu0 0.0
          %2122 = vmatpush1.msra.mxu0 0.0
          %2123 = vmatprep.subr.mxu0 0.0
          %2124 = vmatpush1.msra.mxu0 0.0
          %2125 = vmatprep.subr.mxu0 0.0
          %2126 = vmatpush1.msra.mxu0 0.0
          %2127 = vmatprep.subr.mxu0 0.0
          %2128 = vmatpush1.msra.mxu0 0.0
          %2129 = vmatprep.subr.mxu0 0.0
          %2130 = vmatpush1.msra.mxu0 0.0
          %2131 = vmatprep.subr.mxu0 0.0
          %2132 = vmatpush1.msra.mxu0 0.0
          %2133 = vmatprep.subr.mxu0 0.0
          %2134 = vmatpush1.msra.mxu0 0.0
          %2135 = vmatprep.subr.mxu0 0.0
          %2136 = vmatpush1.msra.mxu0 0.0
          %2137 = vmatprep.subr.mxu0 0.0
          %2138 = vmatpush1.msra.mxu0 0.0
          %2139 = vmatprep.subr.mxu0 0.0
          %2140 = vmatpush1.msra.mxu0 0.0
          %2141 = vmatprep.subr.mxu0 0.0
          %2142 = vmatpush1.msra.mxu0 0.0
          %2143 = vmatprep.subr.mxu0 0.0
          %2144 = vmatpush1.msra.mxu0 0.0
          %2145 = vmatprep.subr.mxu0 0.0
          %2146 = vmatpush1.msra.mxu0 0.0
          %2147 = vmatprep.subr.mxu0 0.0
          %2148 = vmatpush1.msra.mxu0 0.0
          %2149 = vmatprep.subr.mxu0 0.0
          %2150 = vmatpush1.msra.mxu0 0.0
          %2151 = vmatprep.subr.mxu0 0.0
          %2152 = vmatpush1.msra.mxu0 0.0
          %2153 = vmatprep.mubr.f32.mxu0 0.0
          %2154 = vmatmul.mubr.f32.gmra.mrb[0].mxu0 %v1945
          %v2155 = vpop.f32.mrb[0].mxu0
          %v2156 = vadd.f32 0.0, %v2155
          %v2157 = vpop.f32.mrb[0].mxu0
          %v2158 = vadd.f32 0.0, %v2157
          %2159 = vdwg.mxu0
          %2160 = vmatprep.subr.mxu0 %v1943
          %2161 = vmatpush1.msra.mxu0 %v1942
          %2162 = vmatprep.subr.mxu0 0.0
          %2163 = vmatpush1.msra.mxu0 0.0
          %2164 = vmatprep.subr.mxu0 0.0
          %2165 = vmatpush1.msra.mxu0 0.0
          %2166 = vmatprep.subr.mxu0 0.0
          %2167 = vmatpush1.msra.mxu0 0.0
          %2168 = vmatprep.subr.mxu0 0.0
          %2169 = vmatpush1.msra.mxu0 0.0
          %2170 = vmatprep.subr.mxu0 0.0
          %2171 = vmatpush1.msra.mxu0 0.0
          %2172 = vmatprep.subr.mxu0 0.0
          %2173 = vmatpush1.msra.mxu0 0.0
          %2174 = vmatprep.subr.mxu0 0.0
          %2175 = vmatpush1.msra.mxu0 0.0
          %2176 = vmatprep.subr.mxu0 0.0
          %2177 = vmatpush1.msra.mxu0 0.0
          %2178 = vmatprep.subr.mxu0 0.0
          %2179 = vmatpush1.msra.mxu0 0.0
          %2180 = vmatprep.subr.mxu0 0.0
          %2181 = vmatpush1.msra.mxu0 0.0
          %2182 = vmatprep.subr.mxu0 0.0
          %2183 = vmatpush1.msra.mxu0 0.0
          %2184 = vmatprep.subr.mxu0 0.0
          %2185 = vmatpush1.msra.mxu0 0.0
          %2186 = vmatprep.subr.mxu0 0.0
          %2187 = vmatpush1.msra.mxu0 0.0
          %2188 = vmatprep.subr.mxu0 0.0
          %2189 = vmatpush1.msra.mxu0 0.0
          %2190 = vmatprep.subr.mxu0 0.0
          %2191 = vmatpush1.msra.mxu0 0.0
          %2192 = vmatprep.subr.mxu0 0.0
          %2193 = vmatpush1.msra.mxu0 0.0
          %2194 = vmatprep.subr.mxu0 0.0
          %2195 = vmatpush1.msra.mxu0 0.0
          %2196 = vmatprep.subr.mxu0 0.0
          %2197 = vmatpush1.msra.mxu0 0.0
          %2198 = vmatprep.subr.mxu0 0.0
          %2199 = vmatpush1.msra.mxu0 0.0
          %2200 = vmatprep.subr.mxu0 0.0
          %2201 = vmatpush1.msra.mxu0 0.0
          %2202 = vmatprep.subr.mxu0 0.0
          %2203 = vmatpush1.msra.mxu0 0.0
          %2204 = vmatprep.subr.mxu0 0.0
          %2205 = vmatpush1.msra.mxu0 0.0
          %2206 = vmatprep.subr.mxu0 0.0
          %2207 = vmatpush1.msra.mxu0 0.0
          %2208 = vmatprep.subr.mxu0 0.0
          %2209 = vmatpush1.msra.mxu0 0.0
          %2210 = vmatprep.subr.mxu0 0.0
          %2211 = vmatpush1.msra.mxu0 0.0
          %2212 = vmatprep.subr.mxu0 0.0
          %2213 = vmatpush1.msra.mxu0 0.0
          %2214 = vmatprep.subr.mxu0 0.0
          %2215 = vmatpush1.msra.mxu0 0.0
          %2216 = vmatprep.subr.mxu0 0.0
          %2217 = vmatpush1.msra.mxu0 0.0
          %2218 = vmatprep.subr.mxu0 0.0
          %2219 = vmatpush1.msra.mxu0 0.0
          %2220 = vmatprep.subr.mxu0 0.0
          %2221 = vmatpush1.msra.mxu0 0.0
          %2222 = vmatprep.subr.mxu0 0.0
          %2223 = vmatpush1.msra.mxu0 0.0
          %2224 = vmatprep.mubr.f32.mxu0 0.0
          %2225 = vmatmul.mubr.f32.gmra.mrb[0].mxu0 %v1945
          %v2226 = vpop.f32.mrb[0].mxu0
          %v2227 = vadd.f32 0.0, %v2226
          %v2228 = vpop.f32.mrb[0].mxu0
          %v2229 = vadd.f32 0.0, %v2228
          %2230 = vdwg.mxu0
          %v2231 = vld [vmem:[#allocation3] sm:$0xff]
          %v2232 = vld [vmem:[#allocation3 + $0x8] sm:$0xff]
          %v2233 = vld [vmem:[#allocation3 + $0x10] sm:$0xff]
          %v2234 = vld [vmem:[#allocation3 + $0x18] sm:$0xff]
          %v2235 = vld [vmem:[#allocation3 + $0x20] sm:$0xff]
          %v2236 = vld [vmem:[#allocation3 + $0x28] sm:$0xff]
          %v2237 = vld [vmem:[#allocation3 + $0x30] sm:$0xff]
          %v2238 = vld [vmem:[#allocation3 + $0x38] sm:$0xff]
          %v2239 = vadd.f32 %v2231, %v2014
          %v2240 = vadd.f32 %v2232, %v2016
          %v2241 = vadd.f32 %v2233, %v2085
          %v2242 = vadd.f32 %v2234, %v2087
          %v2243 = vadd.f32 %v2235, %v2156
          %v2244 = vadd.f32 %v2236, %v2158
          %v2245 = vadd.f32 %v2237, %v2227
          %v2246 = vadd.f32 %v2238, %v2229
          %v2247 = vld [vmem:[%s7] sm:$0xff]
          %v2248 = vld [vmem:[%s7 + $0x8] sm:$0xff]
          %v2249 = vld [vmem:[%s7 + $0x10] sm:$0xff]
          %v2250 = vld [vmem:[%s7 + $0x18] sm:$0xff]
          %v2251 = vld [vmem:[%s7 + $0x20] sm:$0xff]
          %v2252 = vld [vmem:[%s7 + $0x28] sm:$0xff]
          %v2253 = vld [vmem:[%s7 + $0x30] sm:$0xff]
          %v2254 = vld [vmem:[%s7 + $0x38] sm:$0xff]
          %v2255 = vadd.f32 %v2239, %v2247
          %v2256 = vadd.f32 %v2240, %v2248
          %v2257 = vadd.f32 %v2241, %v2249
          %v2258 = vadd.f32 %v2242, %v2250
          %v2259 = vadd.f32 %v2243, %v2251
          %v2260 = vadd.f32 %v2244, %v2252
          %v2261 = vadd.f32 %v2245, %v2253
          %v2262 = vadd.f32 %v2246, %v2254
          %v2263 = vmul.f32 %v2255, 0.5
          %v2264 = vmul.f32 %v2256, 0.5
          %v2265 = vmul.f32 %v2257, 0.5
          %v2266 = vmul.f32 %v2258, 0.5
          %v2267 = vmul.f32 %v2259, 0.5
          %v2268 = vmul.f32 %v2260, 0.5
          %v2269 = vmul.f32 %v2261, 0.5
          %v2270 = vmul.f32 %v2262, 0.5
          %v2271 = vmul.f32 %v2255, 0.70710677
          %v2272 = vmul.f32 %v2256, 0.70710677
          %v2273 = vmul.f32 %v2257, 0.70710677
          %v2274 = vmul.f32 %v2258, 0.70710677
          %v2275 = vmul.f32 %v2259, 0.70710677
          %v2276 = vmul.f32 %v2260, 0.70710677
          %v2277 = vmul.f32 %v2261, 0.70710677
          %v2278 = vmul.f32 %v2262, 0.70710677
          %v2279 = verf.f32.pop %v2271
          %v2280 = verf.f32.pop %v2272
          %v2281 = verf.f32.pop %v2273
          %v2282 = verf.f32.pop %v2274
          %v2283 = verf.f32.pop %v2275
          %v2284 = verf.f32.pop %v2276
          %v2285 = verf.f32.pop %v2277
          %v2286 = verf.f32.pop %v2278
          %v2287 = vadd.f32 %v2279, 1.0
          %v2288 = vadd.f32 %v2280, 1.0
          %v2289 = vadd.f32 %v2281, 1.0
          %v2290 = vadd.f32 %v2282, 1.0
          %v2291 = vadd.f32 %v2283, 1.0
          %v2292 = vadd.f32 %v2284, 1.0
          %v2293 = vadd.f32 %v2285, 1.0
          %v2294 = vadd.f32 %v2286, 1.0
          %v2295 = vmul.f32 %v2263, %v2287
          %v2296 = vmul.f32 %v2264, %v2288
          %v2297 = vmul.f32 %v2265, %v2289
          %v2298 = vmul.f32 %v2266, %v2290
          %v2299 = vmul.f32 %v2267, %v2291
          %v2300 = vmul.f32 %v2268, %v2292
          %v2301 = vmul.f32 %v2269, %v2293
          %v2302 = vmul.f32 %v2270, %v2294
          %2303 = vst [vmem:[%s8] sm:$0xff] %v2295
          %2304 = vst [vmem:[%s8 + $0x8] sm:$0xff] %v2296
          %2305 = vst [vmem:[%s8 + $0x10] sm:$0xff] %v2297
          %2306 = vst [vmem:[%s8 + $0x18] sm:$0xff] %v2298
          %2307 = vst [vmem:[%s8 + $0x20] sm:$0xff] %v2299
          %2308 = vst [vmem:[%s8 + $0x28] sm:$0xff] %v2300
          %2309 = vst [vmem:[%s8 + $0x30] sm:$0xff] %v2301
          %2310 = vst [vmem:[%s8 + $0x38] sm:$0xff] %v2302
        $region68: #{ffo_forward.1} parent=51 // pred_fallthru
          _
        // Predicated region
        $region69: #{ffo_forward.1} parent=51 // pred_check
          %p2311 = pneg %p226
        $region70: #{ffo_forward.1} parent=51 // pred_check_branch
          %2313 = sbr.rel (%p2311) target = $region72
        $region71: #{ffo_forward.1} parent=51 // pred_region
          _
        $region72: #{ffo_forward.1} parent=51 // pred_fallthru
          _
        // Predicated region
        $region73: #{ffo_forward.1} parent=51 // pred_check
          %p2314 = pneg %p226
        $region74: #{ffo_forward.1} parent=51 // pred_check_branch
          %2316 = sbr.rel (%p2314) target = $region76
        $region75: #{ffo_forward.1} parent=51 // pred_region
          _
        $region76: #{ffo_forward.1} parent=51 // pred_fallthru
          _
      $region52: #{ffo_forward.1} parent=5 // pred_fallthru
        _
      %p2317 = scmp.le.s32.totalorder 2, %s20
      // Predicated region
      $region77: #{ffo_forward.1} parent=5 // pred_check
        %p2318 = pneg %p2317
      $region78: #{ffo_forward.1} parent=5 // pred_check_branch
        %2320 = sbr.rel (%p2318) target = $region80
      $region79: #{ffo_forward.1} parent=5 // pred_region
        %s2321 = ssub.s32 %s20, 2
      $region80: #{ffo_forward.1} parent=5 // pred_fallthru
        _
    $region6: #{ffo_forward.1} parent=1 // loop_footer
      %s24 = sadd.s32 1, %s20
    $region7: #{ffo_forward.1} parent=1 // loop_footer_branch
      %19 = sbr.rel target = $region3
    $region8: #{ffo_forward.1} parent=1 // loop_exit
      _
    %2322 = vsyncpa [#allocation5], 1
    %s2323 = scalar_lea.sflag [#allocation5], 1
    %2324 = vsyncpa %s2323, 1
    %2325 = vsyncpa [#allocation7], 1
    %s2326 = scalar_lea.sflag [#allocation7], 1
    %2327 = vsyncpa %s2326, 1

</llo_original>
